<compile_context>
chip_gen: v7x
topology: tpu7x:2x2x1
jax: 0.10.0
libtpu: 0.0.40
codegen_flags: <defaults>
</compile_context>

<pallas_src>
import math

import jax
import jax.numpy as jnp
from jax import lax
from jax.experimental import pallas as pl
from jax.experimental.pallas import tpu as pltpu

# ---- small, synthetic "config" consistent with AlbertLayer structure ----
BATCH = 2
SEQ = 16
HIDDEN = 128
NUM_HEADS = 4
HEAD_DIM = HIDDEN // NUM_HEADS
INTERMEDIATE = 512
LN_EPS = 1e-12

MM_DTYPE = jnp.bfloat16  # matmul-operand dtype (accumulation stays f32)


def _gelu_new(x):
    # HF "gelu_new": 0.5 * x * (1 + tanh(sqrt(2/pi) * (x + 0.044715 * x^3)))
    c = math.sqrt(2.0 / math.pi)
    return 0.5 * x * (1.0 + jnp.tanh(c * (x + 0.044715 * x * x * x)))


def _layernorm(x, gamma, beta, eps):
    mean = jnp.mean(x, axis=-1, keepdims=True)
    var = jnp.mean((x - mean) ** 2, axis=-1, keepdims=True)
    inv = lax.rsqrt(var + eps)
    return (x - mean) * inv * gamma + beta


def albert_layer_kernel(
    x_ref,
    wqkv_ref, bqkv_ref,
    wo_ref, bo_ref, g1_ref, be1_ref,
    wf_ref, bf_ref, wfo_ref, bfo_ref, g2_ref, be2_ref,
    o_ref,
):
    M = BATCH * SEQ
    # Whole (B*S, H) slab in one invocation; everything fits in VMEM at these sizes.
    x = x_ref[...].astype(jnp.float32)                                   # (M, H) f32

    # ---- fused Q/K/V projection: one (M,H)@(H,3H) matmul ----
    qkv = jnp.dot(x.astype(MM_DTYPE), wqkv_ref[...],
                  preferred_element_type=jnp.float32) + bqkv_ref[...]    # (M, 3H) f32

    # ---- split heads into one batched (B*NH, S, D) layout ----
    # Only lane slices + major-dim reshapes (free) + a major-axis concat; the batch
    # index is b*NUM_HEADS + h, matching the merge below.
    def head_batch(base):
        parts = []
        for h in range(NUM_HEADS):
            c0 = base + h * HEAD_DIM
            t = qkv[:, c0:c0 + HEAD_DIM].astype(MM_DTYPE)                # (M, D) bf16
            parts.append(t.reshape(BATCH, 1, SEQ, HEAD_DIM))             # major split
        t = jnp.concatenate(parts, axis=1)                               # (B, NH, S, D)
        return t.reshape(BATCH * NUM_HEADS, SEQ, HEAD_DIM)               # major merge

    qh = head_batch(0)
    kh = head_batch(HIDDEN)
    vh = head_batch(2 * HIDDEN)

    # ---- attention: all (batch, head) pairs in two batched MXU contractions ----
    scale = 1.0 / math.sqrt(HEAD_DIM)
    scores = jnp.einsum("bqd,bkd->bqk", qh, kh,
                        preferred_element_type=jnp.float32) * scale      # (B*NH, S, S)
    scores = scores - jnp.max(scores, axis=-1, keepdims=True)
    e = jnp.exp(scores)
    probs = e * pl.reciprocal(jnp.sum(e, axis=-1, keepdims=True), approx=True)
    ctx = jnp.einsum("bqk,bkd->bqd", probs.astype(MM_DTYPE), vh,
                     preferred_element_type=jnp.float32)                 # (B*NH, S, D)

    # ---- merge heads in-register (no VMEM scratch, no masked stores) ----
    ctx4 = ctx.reshape(BATCH, NUM_HEADS, SEQ, HEAD_DIM)                  # major split
    ctx2d = jnp.concatenate(
        [ctx4[:, h, :, :].reshape(M, HEAD_DIM) for h in range(NUM_HEADS)],
        axis=-1)                                                         # (M, H) f32

    # ---- single output projection + attention LayerNorm (residual) ----
    proj = jnp.dot(ctx2d.astype(MM_DTYPE), wo_ref[...],
                   preferred_element_type=jnp.float32) + bo_ref[...]
    attn_out = _layernorm(x + proj, g1_ref[...], be1_ref[...], LN_EPS)   # (M, H) f32

    # ---- feed-forward (gelu_new) + final LayerNorm (residual) ----
    ff = jnp.dot(attn_out.astype(MM_DTYPE), wf_ref[...],
                 preferred_element_type=jnp.float32) + bf_ref[...]       # (M, I)
    ff = _gelu_new(ff)
    ff = jnp.dot(ff.astype(MM_DTYPE), wfo_ref[...],
                 preferred_element_type=jnp.float32) + bfo_ref[...]      # (M, H)

    out = _layernorm(ff + attn_out, g2_ref[...], be2_ref[...], LN_EPS)
    o_ref[...] = out.astype(o_ref.dtype)


def albert_layer_forward(x, params):
    B, S, H = x.shape
    M = B * S
    I = params["wf"].shape[1]

    # Pack QKV weights/biases; cast matmul weights to bf16 (halves weight DMA bytes).
    wqkv = jnp.concatenate([params["wq"], params["wk"], params["wv"]], axis=1).astype(MM_DTYPE)
    bqkv = jnp.concatenate([params["bq"], params["bk"], params["bv"]], axis=1)
    wo = params["wo"].astype(MM_DTYPE)
    wf = params["wf"].astype(MM_DTYPE)
    wfo = params["wfo"].astype(MM_DTYPE)

    x2d = x.reshape(M, H)

    full = lambda shape: pl.BlockSpec(shape, lambda i: (0, 0))

    out2d = pl.pallas_call(
        albert_layer_kernel,
        out_shape=jax.ShapeDtypeStruct((M, H), x.dtype),
        grid_spec=pltpu.PrefetchScalarGridSpec(
            num_scalar_prefetch=0,
            grid=(1,),
            in_specs=[
                full((M, H)),                        # hidden_states (flattened batch)
                full((H, 3 * H)), full((1, 3 * H)),  # fused QKV W, b
                full((H, H)), full((1, H)),          # attn dense W, b
                full((1, H)), full((1, H)),          # attn LayerNorm gamma, beta
                full((H, I)), full((1, I)),          # ffn W, b
                full((I, H)), full((1, H)),          # ffn_output W, b
                full((1, H)), full((1, H)),          # full-layer LayerNorm gamma, beta
            ],
            out_specs=full((M, H)),
        ),
        compiler_params=pltpu.CompilerParams(
            dimension_semantics=("arbitrary",),
            vmem_limit_bytes=32 * 1024 * 1024,
        ),
    )(
        x2d,
        wqkv, bqkv,
        wo, params["bo"], params["g1"], params["be1"],
        wf, params["bf"], wfo, params["bfo"], params["g2"], params["be2"],
    )
    return out2d.reshape(B, S, H)


def reference_forward(x, params):
    """Pure-JAX f32 reference matching the PyTorch AlbertLayer.forward (eval mode)."""
    B, S, H = x.shape
    q = x @ params["wq"] + params["bq"][0]
    k = x @ params["wk"] + params["bk"][0]
    v = x @ params["wv"] + params["bv"][0]

    def split_heads(t):
        return t.reshape(B, S, NUM_HEADS, HEAD_DIM).transpose(0, 2, 1, 3)

    qh, kh, vh = split_heads(q), split_heads(k), split_heads(v)
    scores = jnp.einsum("bhqd,bhkd->bhqk", qh, kh) / math.sqrt(HEAD_DIM)
    probs = jax.nn.softmax(scores, axis=-1)
    ctx = jnp.einsum("bhqk,bhkd->bhqd", probs, vh).transpose(0, 2, 1, 3).reshape(B, S, H)
    proj = ctx @ params["wo"] + params["bo"][0]

    def ln(t, g, b):
        m = jnp.mean(t, axis=-1, keepdims=True)
        va = jnp.mean((t - m) ** 2, axis=-1, keepdims=True)
        return (t - m) / jnp.sqrt(va + LN_EPS) * g[0] + b[0]

    attn_out = ln(x + proj, params["g1"], params["be1"])
    ff = _gelu_new(attn_out @ params["wf"] + params["bf"][0])
    ff = ff @ params["wfo"] + params["bfo"][0]
    return ln(ff + attn_out, params["g2"], params["be2"])


def make_params(key):
    ks = jax.random.split(key, 8)
    std = 0.02
    p = {
        # all linear weights stored as [in, out] (i.e. torch_weight.T)
        "wq": jax.random.normal(ks[0], (HIDDEN, HIDDEN), jnp.float32) * std,
        "wk": jax.random.normal(ks[1], (HIDDEN, HIDDEN), jnp.float32) * std,
        "wv": jax.random.normal(ks[2], (HIDDEN, HIDDEN), jnp.float32) * std,
        "wo": jax.random.normal(ks[3], (HIDDEN, HIDDEN), jnp.float32) * std,
        "wf": jax.random.normal(ks[4], (HIDDEN, INTERMEDIATE), jnp.float32) * std,
        "wfo": jax.random.normal(ks[5], (INTERMEDIATE, HIDDEN), jnp.float32) * std,
        "bq": jax.random.normal(ks[6], (1, HIDDEN), jnp.float32) * std,
        "bk": jnp.zeros((1, HIDDEN), jnp.float32),
        "bv": jnp.zeros((1, HIDDEN), jnp.float32),
        "bo": jax.random.normal(ks[7], (1, HIDDEN), jnp.float32) * std,
        "bf": jnp.zeros((1, INTERMEDIATE), jnp.float32),
        "bfo": jnp.zeros((1, HIDDEN), jnp.float32),
        "g1": jnp.ones((1, HIDDEN), jnp.float32),
        "be1": jnp.zeros((1, HIDDEN), jnp.float32),
        "g2": jnp.ones((1, HIDDEN), jnp.float32),
        "be2": jnp.zeros((1, HIDDEN), jnp.float32),
    }
    return p


if __name__ == "__main__":
    key = jax.random.PRNGKey(0)
    kx, kp = jax.random.split(key)
    x = jax.random.normal(kx, (BATCH, SEQ, HIDDEN), jnp.float32)
    params = make_params(kp)

    out = albert_layer_forward(x, params)
    out = jax.block_until_ready(out)

    ref = reference_forward(x, params)
    assert out.shape == (BATCH, SEQ, HIDDEN)
    max_err = float(jnp.max(jnp.abs(out - ref)))
    # bf16 matmul operands + approx softmax reciprocal vs. pure-f32 reference:
    # observed error ~1e-3; gate at 1e-2.
    assert max_err < 1e-2, f"max abs err {max_err}"
    print("KERNEL_OK")
</pallas_src>

<mosaic_0001>
module attributes {stable_mosaic.version = 11 : i64} {
  func.func @albert_layer_kernel(%arg0: i32, %arg1: memref<32x128xf32, #tpu.memory_space<vmem>>, %arg2: memref<128x384xbf16, #tpu.memory_space<vmem>>, %arg3: memref<1x384xf32, #tpu.memory_space<vmem>>, %arg4: memref<128x128xbf16, #tpu.memory_space<vmem>>, %arg5: memref<1x128xf32, #tpu.memory_space<vmem>>, %arg6: memref<1x128xf32, #tpu.memory_space<vmem>>, %arg7: memref<1x128xf32, #tpu.memory_space<vmem>>, %arg8: memref<128x512xbf16, #tpu.memory_space<vmem>>, %arg9: memref<1x512xf32, #tpu.memory_space<vmem>>, %arg10: memref<512x128xbf16, #tpu.memory_space<vmem>>, %arg11: memref<1x128xf32, #tpu.memory_space<vmem>>, %arg12: memref<1x128xf32, #tpu.memory_space<vmem>>, %arg13: memref<1x128xf32, #tpu.memory_space<vmem>>, %arg14: memref<32x128xf32, #tpu.memory_space<vmem>>) attributes {dimension_semantics = [#tpu.dimension_semantics<arbitrary>], iteration_bounds = array<i64: 1>, scalar_prefetch = 0 : i64, scratch_operands = 0 : i64, tpu.core_type = #tpu.core_type<tc>, window_params = [{pipeline_mode = #tpu.pipeline_mode<synchronous>, transform_indices = @transform_0, window_bounds = array<i64: 32, 128>}, {pipeline_mode = #tpu.pipeline_mode<synchronous>, transform_indices = @transform_1, window_bounds = array<i64: 128, 384>}, {pipeline_mode = #tpu.pipeline_mode<synchronous>, transform_indices = @transform_2, window_bounds = array<i64: 1, 384>}, {pipeline_mode = #tpu.pipeline_mode<synchronous>, transform_indices = @transform_3, window_bounds = array<i64: 128, 128>}, {pipeline_mode = #tpu.pipeline_mode<synchronous>, transform_indices = @transform_4, window_bounds = array<i64: 1, 128>}, {pipeline_mode = #tpu.pipeline_mode<synchronous>, transform_indices = @transform_5, window_bounds = array<i64: 1, 128>}, {pipeline_mode = #tpu.pipeline_mode<synchronous>, transform_indices = @transform_6, window_bounds = array<i64: 1, 128>}, {pipeline_mode = #tpu.pipeline_mode<synchronous>, transform_indices = @transform_7, window_bounds = array<i64: 128, 512>}, {pipeline_mode = #tpu.pipeline_mode<synchronous>, transform_indices = @transform_8, window_bounds = array<i64: 1, 512>}, {pipeline_mode = #tpu.pipeline_mode<synchronous>, transform_indices = @transform_9, window_bounds = array<i64: 512, 128>}, {pipeline_mode = #tpu.pipeline_mode<synchronous>, transform_indices = @transform_10, window_bounds = array<i64: 1, 128>}, {pipeline_mode = #tpu.pipeline_mode<synchronous>, transform_indices = @transform_11, window_bounds = array<i64: 1, 128>}, {pipeline_mode = #tpu.pipeline_mode<synchronous>, transform_indices = @transform_12, window_bounds = array<i64: 1, 128>}, {pipeline_mode = #tpu.pipeline_mode<synchronous>, transform_indices = @transform_13, window_bounds = array<i64: 32, 128>}]} {
    %c0 = arith.constant 0 : index
    %c0_0 = arith.constant 0 : index
    %0 = vector.load %arg1[%c0, %c0_0] : memref<32x128xf32, #tpu.memory_space<vmem>>, vector<32x128xf32>
    %1 = arith.truncf %0 : vector<32x128xf32> to vector<32x128xbf16>
    %c0_1 = arith.constant 0 : index
    %c0_2 = arith.constant 0 : index
    %2 = vector.load %arg2[%c0_1, %c0_2] : memref<128x384xbf16, #tpu.memory_space<vmem>>, vector<128x384xbf16>
    %cst = arith.constant dense<0.000000e+00> : vector<32x384xf32>
    %3 = tpu.matmul %1, %2, %cst {dimension_numbers = #tpu.dot_dimension_numbers<[1], [0], [0], [1], [0, 0, 1, 1], [], []>} : vector<32x128xbf16>, vector<128x384xbf16>, vector<32x384xf32> -> vector<32x384xf32>
    %c0_3 = arith.constant 0 : index
    %c0_4 = arith.constant 0 : index
    %4 = vector.load %arg3[%c0_3, %c0_4] : memref<1x384xf32, #tpu.memory_space<vmem>>, vector<1x384xf32>
    %5 = vector.broadcast %4 : vector<1x384xf32> to vector<32x384xf32>
    %6 = arith.addf %3, %5 : vector<32x384xf32>
    %7 = vector.extract_strided_slice %6 {offsets = [0, 0], sizes = [32, 32], strides = [1, 1]} : vector<32x384xf32> to vector<32x32xf32>
    %8 = arith.truncf %7 : vector<32x32xf32> to vector<32x32xbf16>
    %9 = vector.shape_cast %8 : vector<32x32xbf16> to vector<2x1x16x32xbf16>
    %10 = vector.extract_strided_slice %6 {offsets = [0, 32], sizes = [32, 32], strides = [1, 1]} : vector<32x384xf32> to vector<32x32xf32>
    %11 = arith.truncf %10 : vector<32x32xf32> to vector<32x32xbf16>
    %12 = vector.shape_cast %11 : vector<32x32xbf16> to vector<2x1x16x32xbf16>
    %13 = vector.extract_strided_slice %6 {offsets = [0, 64], sizes = [32, 32], strides = [1, 1]} : vector<32x384xf32> to vector<32x32xf32>
    %14 = arith.truncf %13 : vector<32x32xf32> to vector<32x32xbf16>
    %15 = vector.shape_cast %14 : vector<32x32xbf16> to vector<2x1x16x32xbf16>
    %16 = vector.extract_strided_slice %6 {offsets = [0, 96], sizes = [32, 32], strides = [1, 1]} : vector<32x384xf32> to vector<32x32xf32>
    %17 = arith.truncf %16 : vector<32x32xf32> to vector<32x32xbf16>
    %18 = vector.shape_cast %17 : vector<32x32xbf16> to vector<2x1x16x32xbf16>
    %19 = tpu.concatenate %9, %12, %15, %18 in 1 : vector<2x1x16x32xbf16>, vector<2x1x16x32xbf16>, vector<2x1x16x32xbf16>, vector<2x1x16x32xbf16> -> vector<2x4x16x32xbf16>
    %20 = vector.shape_cast %19 : vector<2x4x16x32xbf16> to vector<8x16x32xbf16>
    %21 = vector.extract_strided_slice %6 {offsets = [0, 128], sizes = [32, 32], strides = [1, 1]} : vector<32x384xf32> to vector<32x32xf32>
    %22 = arith.truncf %21 : vector<32x32xf32> to vector<32x32xbf16>
    %23 = vector.shape_cast %22 : vector<32x32xbf16> to vector<2x1x16x32xbf16>
    %24 = vector.extract_strided_slice %6 {offsets = [0, 160], sizes = [32, 32], strides = [1, 1]} : vector<32x384xf32> to vector<32x32xf32>
    %25 = arith.truncf %24 : vector<32x32xf32> to vector<32x32xbf16>
    %26 = vector.shape_cast %25 : vector<32x32xbf16> to vector<2x1x16x32xbf16>
    %27 = vector.extract_strided_slice %6 {offsets = [0, 192], sizes = [32, 32], strides = [1, 1]} : vector<32x384xf32> to vector<32x32xf32>
    %28 = arith.truncf %27 : vector<32x32xf32> to vector<32x32xbf16>
    %29 = vector.shape_cast %28 : vector<32x32xbf16> to vector<2x1x16x32xbf16>
    %30 = vector.extract_strided_slice %6 {offsets = [0, 224], sizes = [32, 32], strides = [1, 1]} : vector<32x384xf32> to vector<32x32xf32>
    %31 = arith.truncf %30 : vector<32x32xf32> to vector<32x32xbf16>
    %32 = vector.shape_cast %31 : vector<32x32xbf16> to vector<2x1x16x32xbf16>
    %33 = tpu.concatenate %23, %26, %29, %32 in 1 : vector<2x1x16x32xbf16>, vector<2x1x16x32xbf16>, vector<2x1x16x32xbf16>, vector<2x1x16x32xbf16> -> vector<2x4x16x32xbf16>
    %34 = vector.shape_cast %33 : vector<2x4x16x32xbf16> to vector<8x16x32xbf16>
    %35 = vector.extract_strided_slice %6 {offsets = [0, 256], sizes = [32, 32], strides = [1, 1]} : vector<32x384xf32> to vector<32x32xf32>
    %36 = arith.truncf %35 : vector<32x32xf32> to vector<32x32xbf16>
    %37 = vector.shape_cast %36 : vector<32x32xbf16> to vector<2x1x16x32xbf16>
    %38 = vector.extract_strided_slice %6 {offsets = [0, 288], sizes = [32, 32], strides = [1, 1]} : vector<32x384xf32> to vector<32x32xf32>
    %39 = arith.truncf %38 : vector<32x32xf32> to vector<32x32xbf16>
    %40 = vector.shape_cast %39 : vector<32x32xbf16> to vector<2x1x16x32xbf16>
    %41 = vector.extract_strided_slice %6 {offsets = [0, 320], sizes = [32, 32], strides = [1, 1]} : vector<32x384xf32> to vector<32x32xf32>
    %42 = arith.truncf %41 : vector<32x32xf32> to vector<32x32xbf16>
    %43 = vector.shape_cast %42 : vector<32x32xbf16> to vector<2x1x16x32xbf16>
    %44 = vector.extract_strided_slice %6 {offsets = [0, 352], sizes = [32, 32], strides = [1, 1]} : vector<32x384xf32> to vector<32x32xf32>
    %45 = arith.truncf %44 : vector<32x32xf32> to vector<32x32xbf16>
    %46 = vector.shape_cast %45 : vector<32x32xbf16> to vector<2x1x16x32xbf16>
    %47 = tpu.concatenate %37, %40, %43, %46 in 1 : vector<2x1x16x32xbf16>, vector<2x1x16x32xbf16>, vector<2x1x16x32xbf16>, vector<2x1x16x32xbf16> -> vector<2x4x16x32xbf16>
    %48 = vector.shape_cast %47 : vector<2x4x16x32xbf16> to vector<8x16x32xbf16>
    "tpu.trace_start"() <{level = 10 : i32, message = "bqd,bkd->bqk"}> : () -> ()
    %cst_5 = arith.constant dense<0.000000e+00> : vector<8x16x16xf32>
    %49 = tpu.matmul %20, %34, %cst_5 {dimension_numbers = #tpu.dot_dimension_numbers<[2], [2], [1], [1], [0, 0, 0, 1, 1, 1], [0], [0]>} : vector<8x16x32xbf16>, vector<8x16x32xbf16>, vector<8x16x16xf32> -> vector<8x16x16xf32>
    "tpu.trace_stop"() : () -> ()
    %cst_6 = arith.constant 0.176776692 : f32
    %50 = vector.broadcast %cst_6 : f32 to vector<8x16x16xf32>
    %51 = arith.mulf %49, %50 : vector<8x16x16xf32>
    %cst_7 = arith.constant dense<0xFF800000> : vector<8x16xf32>
    %52 = vector.multi_reduction <maximumf>, %51, %cst_7 [2] : vector<8x16x16xf32> to vector<8x16xf32>
    %53 = vector.shape_cast %52 : vector<8x16xf32> to vector<8x16x1xf32>
    %54 = vector.broadcast %53 : vector<8x16x1xf32> to vector<8x16x16xf32>
    %55 = arith.subf %51, %54 : vector<8x16x16xf32>
    %56 = math.exp %55 : vector<8x16x16xf32>
    %cst_8 = arith.constant dense<0.000000e+00> : vector<8x16xf32>
    %57 = vector.multi_reduction <add>, %56, %cst_8 [2] : vector<8x16x16xf32> to vector<8x16xf32>
    %58 = vector.shape_cast %57 : vector<8x16xf32> to vector<8x16x1xf32>
    %59 = tpu.reciprocal %58 {approx = true} : vector<8x16x1xf32> -> vector<8x16x1xf32>
    %60 = vector.broadcast %59 : vector<8x16x1xf32> to vector<8x16x16xf32>
    %61 = arith.mulf %56, %60 : vector<8x16x16xf32>
    %62 = arith.truncf %61 : vector<8x16x16xf32> to vector<8x16x16xbf16>
    "tpu.trace_start"() <{level = 10 : i32, message = "bqk,bkd->bqd"}> : () -> ()
    %cst_9 = arith.constant dense<0.000000e+00> : vector<8x16x32xf32>
    %63 = tpu.matmul %62, %48, %cst_9 {dimension_numbers = #tpu.dot_dimension_numbers<[2], [1], [1], [2], [0, 0, 0, 1, 1, 2], [0], [0]>} : vector<8x16x16xbf16>, vector<8x16x32xbf16>, vector<8x16x32xf32> -> vector<8x16x32xf32>
    "tpu.trace_stop"() : () -> ()
    %64 = vector.shape_cast %63 : vector<8x16x32xf32> to vector<2x4x16x32xf32>
    %65 = vector.extract_strided_slice %64 {offsets = [0, 0, 0, 0], sizes = [2, 1, 16, 32], strides = [1, 1, 1, 1]} : vector<2x4x16x32xf32> to vector<2x1x16x32xf32>
    %66 = vector.shape_cast %65 : vector<2x1x16x32xf32> to vector<2x16x32xf32>
    %67 = vector.shape_cast %66 : vector<2x16x32xf32> to vector<32x32xf32>
    %68 = vector.extract_strided_slice %64 {offsets = [0, 1, 0, 0], sizes = [2, 1, 16, 32], strides = [1, 1, 1, 1]} : vector<2x4x16x32xf32> to vector<2x1x16x32xf32>
    %69 = vector.shape_cast %68 : vector<2x1x16x32xf32> to vector<2x16x32xf32>
    %70 = vector.shape_cast %69 : vector<2x16x32xf32> to vector<32x32xf32>
    %71 = vector.extract_strided_slice %64 {offsets = [0, 2, 0, 0], sizes = [2, 1, 16, 32], strides = [1, 1, 1, 1]} : vector<2x4x16x32xf32> to vector<2x1x16x32xf32>
    %72 = vector.shape_cast %71 : vector<2x1x16x32xf32> to vector<2x16x32xf32>
    %73 = vector.shape_cast %72 : vector<2x16x32xf32> to vector<32x32xf32>
    %74 = vector.extract_strided_slice %64 {offsets = [0, 3, 0, 0], sizes = [2, 1, 16, 32], strides = [1, 1, 1, 1]} : vector<2x4x16x32xf32> to vector<2x1x16x32xf32>
    %75 = vector.shape_cast %74 : vector<2x1x16x32xf32> to vector<2x16x32xf32>
    %76 = vector.shape_cast %75 : vector<2x16x32xf32> to vector<32x32xf32>
    %77 = tpu.concatenate %67, %70, %73, %76 in 1 : vector<32x32xf32>, vector<32x32xf32>, vector<32x32xf32>, vector<32x32xf32> -> vector<32x128xf32>
    %78 = arith.truncf %77 : vector<32x128xf32> to vector<32x128xbf16>
    %c0_10 = arith.constant 0 : index
    %c0_11 = arith.constant 0 : index
    %79 = vector.load %arg4[%c0_10, %c0_11] : memref<128x128xbf16, #tpu.memory_space<vmem>>, vector<128x128xbf16>
    %cst_12 = arith.constant dense<0.000000e+00> : vector<32x128xf32>
    %80 = tpu.matmul %78, %79, %cst_12 {dimension_numbers = #tpu.dot_dimension_numbers<[1], [0], [0], [1], [0, 0, 1, 1], [], []>} : vector<32x128xbf16>, vector<128x128xbf16>, vector<32x128xf32> -> vector<32x128xf32>
    %c0_13 = arith.constant 0 : index
    %c0_14 = arith.constant 0 : index
    %81 = vector.load %arg5[%c0_13, %c0_14] : memref<1x128xf32, #tpu.memory_space<vmem>>, vector<1x128xf32>
    %82 = vector.broadcast %81 : vector<1x128xf32> to vector<32x128xf32>
    %83 = arith.addf %80, %82 : vector<32x128xf32>
    %84 = arith.addf %0, %83 : vector<32x128xf32>
    %c0_15 = arith.constant 0 : index
    %c0_16 = arith.constant 0 : index
    %85 = vector.load %arg6[%c0_15, %c0_16] : memref<1x128xf32, #tpu.memory_space<vmem>>, vector<1x128xf32>
    %c0_17 = arith.constant 0 : index
    %c0_18 = arith.constant 0 : index
    %86 = vector.load %arg7[%c0_17, %c0_18] : memref<1x128xf32, #tpu.memory_space<vmem>>, vector<1x128xf32>
    %cst_19 = arith.constant dense<0.000000e+00> : vector<32xf32>
    %87 = vector.multi_reduction <add>, %84, %cst_19 [1] : vector<32x128xf32> to vector<32xf32>
    %88 = vector.shape_cast %87 : vector<32xf32> to vector<32x1xf32>
    %cst_20 = arith.constant 1.280000e+02 : f32
    %89 = vector.broadcast %cst_20 : f32 to vector<32x1xf32>
    %90 = arith.divf %88, %89 : vector<32x1xf32>
    %91 = vector.broadcast %90 : vector<32x1xf32> to vector<32x128xf32>
    %92 = arith.subf %84, %91 : vector<32x128xf32>
    %93 = arith.mulf %92, %92 : vector<32x128xf32>
    %cst_21 = arith.constant dense<0.000000e+00> : vector<32xf32>
    %94 = vector.multi_reduction <add>, %93, %cst_21 [1] : vector<32x128xf32> to vector<32xf32>
    %95 = vector.shape_cast %94 : vector<32xf32> to vector<32x1xf32>
    %cst_22 = arith.constant 1.280000e+02 : f32
    %96 = vector.broadcast %cst_22 : f32 to vector<32x1xf32>
    %97 = arith.divf %95, %96 : vector<32x1xf32>
    %cst_23 = arith.constant 9.99999996E-13 : f32
    %98 = vector.broadcast %cst_23 : f32 to vector<32x1xf32>
    %99 = arith.addf %97, %98 : vector<32x1xf32>
    %100 = math.rsqrt %99 : vector<32x1xf32>
    %101 = vector.broadcast %90 : vector<32x1xf32> to vector<32x128xf32>
    %102 = arith.subf %84, %101 : vector<32x128xf32>
    %103 = vector.broadcast %100 : vector<32x1xf32> to vector<32x128xf32>
    %104 = arith.mulf %102, %103 : vector<32x128xf32>
    %105 = vector.broadcast %85 : vector<1x128xf32> to vector<32x128xf32>
    %106 = arith.mulf %104, %105 : vector<32x128xf32>
    %107 = vector.broadcast %86 : vector<1x128xf32> to vector<32x128xf32>
    %108 = arith.addf %106, %107 : vector<32x128xf32>
    %109 = arith.truncf %108 : vector<32x128xf32> to vector<32x128xbf16>
    %c0_24 = arith.constant 0 : index
    %c0_25 = arith.constant 0 : index
    %110 = vector.load %arg8[%c0_24, %c0_25] : memref<128x512xbf16, #tpu.memory_space<vmem>>, vector<128x512xbf16>
    %cst_26 = arith.constant dense<0.000000e+00> : vector<32x512xf32>
    %111 = tpu.matmul %109, %110, %cst_26 {dimension_numbers = #tpu.dot_dimension_numbers<[1], [0], [0], [1], [0, 0, 1, 1], [], []>} : vector<32x128xbf16>, vector<128x512xbf16>, vector<32x512xf32> -> vector<32x512xf32>
    %c0_27 = arith.constant 0 : index
    %c0_28 = arith.constant 0 : index
    %112 = vector.load %arg9[%c0_27, %c0_28] : memref<1x512xf32, #tpu.memory_space<vmem>>, vector<1x512xf32>
    %113 = vector.broadcast %112 : vector<1x512xf32> to vector<32x512xf32>
    %114 = arith.addf %111, %113 : vector<32x512xf32>
    %cst_29 = arith.constant 5.000000e-01 : f32
    %115 = vector.broadcast %cst_29 : f32 to vector<32x512xf32>
    %116 = arith.mulf %115, %114 : vector<32x512xf32>
    %cst_30 = arith.constant 4.471500e-02 : f32
    %117 = vector.broadcast %cst_30 : f32 to vector<32x512xf32>
    %118 = arith.mulf %117, %114 : vector<32x512xf32>
    %119 = arith.mulf %118, %114 : vector<32x512xf32>
    %120 = arith.mulf %119, %114 : vector<32x512xf32>
    %121 = arith.addf %114, %120 : vector<32x512xf32>
    %cst_31 = arith.constant 0.797884583 : f32
    %122 = vector.broadcast %cst_31 : f32 to vector<32x512xf32>
    %123 = arith.mulf %122, %121 : vector<32x512xf32>
    %124 = math.tanh %123 : vector<32x512xf32>
    %cst_32 = arith.constant 1.000000e+00 : f32
    %125 = vector.broadcast %cst_32 : f32 to vector<32x512xf32>
    %126 = arith.addf %125, %124 : vector<32x512xf32>
    %127 = arith.mulf %116, %126 : vector<32x512xf32>
    %128 = arith.truncf %127 : vector<32x512xf32> to vector<32x512xbf16>
    %c0_33 = arith.constant 0 : index
    %c0_34 = arith.constant 0 : index
    %129 = vector.load %arg10[%c0_33, %c0_34] : memref<512x128xbf16, #tpu.memory_space<vmem>>, vector<512x128xbf16>
    %cst_35 = arith.constant dense<0.000000e+00> : vector<32x128xf32>
    %130 = tpu.matmul %128, %129, %cst_35 {dimension_numbers = #tpu.dot_dimension_numbers<[1], [0], [0], [1], [0, 0, 1, 1], [], []>} : vector<32x512xbf16>, vector<512x128xbf16>, vector<32x128xf32> -> vector<32x128xf32>
    %c0_36 = arith.constant 0 : index
    %c0_37 = arith.constant 0 : index
    %131 = vector.load %arg11[%c0_36, %c0_37] : memref<1x128xf32, #tpu.memory_space<vmem>>, vector<1x128xf32>
    %132 = vector.broadcast %131 : vector<1x128xf32> to vector<32x128xf32>
    %133 = arith.addf %130, %132 : vector<32x128xf32>
    %134 = arith.addf %133, %108 : vector<32x128xf32>
    %c0_38 = arith.constant 0 : index
    %c0_39 = arith.constant 0 : index
    %135 = vector.load %arg12[%c0_38, %c0_39] : memref<1x128xf32, #tpu.memory_space<vmem>>, vector<1x128xf32>
    %c0_40 = arith.constant 0 : index
    %c0_41 = arith.constant 0 : index
    %136 = vector.load %arg13[%c0_40, %c0_41] : memref<1x128xf32, #tpu.memory_space<vmem>>, vector<1x128xf32>
    %cst_42 = arith.constant dense<0.000000e+00> : vector<32xf32>
    %137 = vector.multi_reduction <add>, %134, %cst_42 [1] : vector<32x128xf32> to vector<32xf32>
    %138 = vector.shape_cast %137 : vector<32xf32> to vector<32x1xf32>
    %cst_43 = arith.constant 1.280000e+02 : f32
    %139 = vector.broadcast %cst_43 : f32 to vector<32x1xf32>
    %140 = arith.divf %138, %139 : vector<32x1xf32>
    %141 = vector.broadcast %140 : vector<32x1xf32> to vector<32x128xf32>
    %142 = arith.subf %134, %141 : vector<32x128xf32>
    %143 = arith.mulf %142, %142 : vector<32x128xf32>
    %cst_44 = arith.constant dense<0.000000e+00> : vector<32xf32>
    %144 = vector.multi_reduction <add>, %143, %cst_44 [1] : vector<32x128xf32> to vector<32xf32>
    %145 = vector.shape_cast %144 : vector<32xf32> to vector<32x1xf32>
    %cst_45 = arith.constant 1.280000e+02 : f32
    %146 = vector.broadcast %cst_45 : f32 to vector<32x1xf32>
    %147 = arith.divf %145, %146 : vector<32x1xf32>
    %cst_46 = arith.constant 9.99999996E-13 : f32
    %148 = vector.broadcast %cst_46 : f32 to vector<32x1xf32>
    %149 = arith.addf %147, %148 : vector<32x1xf32>
    %150 = math.rsqrt %149 : vector<32x1xf32>
    %151 = vector.broadcast %140 : vector<32x1xf32> to vector<32x128xf32>
    %152 = arith.subf %134, %151 : vector<32x128xf32>
    %153 = vector.broadcast %150 : vector<32x1xf32> to vector<32x128xf32>
    %154 = arith.mulf %152, %153 : vector<32x128xf32>
    %155 = vector.broadcast %135 : vector<1x128xf32> to vector<32x128xf32>
    %156 = arith.mulf %154, %155 : vector<32x128xf32>
    %157 = vector.broadcast %136 : vector<1x128xf32> to vector<32x128xf32>
    %158 = arith.addf %156, %157 : vector<32x128xf32>
    %c0_47 = arith.constant 0 : index
    %c0_48 = arith.constant 0 : index
    %159 = vector.load %arg14[%c0_47, %c0_48] : memref<32x128xf32, #tpu.memory_space<vmem>>, vector<32x128xf32>
    tpu.vector_store %arg14[%c0_47, %c0_48], %158 {strides = array<i32>} : memref<32x128xf32, #tpu.memory_space<vmem>>, vector<32x128xf32>,
    return
  }
  func.func @transform_0(%arg0: i32) -> (i32, i32) {
    %c0_i32 = arith.constant 0 : i32
    %c0_i32_0 = arith.constant 0 : i32
    %c0_i32_1 = arith.constant 0 : i32
    return %c0_i32, %c0_i32_0 : i32, i32
  }
  func.func @transform_1(%arg0: i32) -> (i32, i32) {
    %c0_i32 = arith.constant 0 : i32
    %c0_i32_0 = arith.constant 0 : i32
    %c0_i32_1 = arith.constant 0 : i32
    return %c0_i32, %c0_i32_0 : i32, i32
  }
  func.func @transform_2(%arg0: i32) -> (i32, i32) {
    %c0_i32 = arith.constant 0 : i32
    %c0_i32_0 = arith.constant 0 : i32
    %c0_i32_1 = arith.constant 0 : i32
    return %c0_i32, %c0_i32_0 : i32, i32
  }
  func.func @transform_3(%arg0: i32) -> (i32, i32) {
    %c0_i32 = arith.constant 0 : i32
    %c0_i32_0 = arith.constant 0 : i32
    %c0_i32_1 = arith.constant 0 : i32
    return %c0_i32, %c0_i32_0 : i32, i32
  }
  func.func @transform_4(%arg0: i32) -> (i32, i32) {
    %c0_i32 = arith.constant 0 : i32
    %c0_i32_0 = arith.constant 0 : i32
    %c0_i32_1 = arith.constant 0 : i32
    return %c0_i32, %c0_i32_0 : i32, i32
  }
  func.func @transform_5(%arg0: i32) -> (i32, i32) {
    %c0_i32 = arith.constant 0 : i32
    %c0_i32_0 = arith.constant 0 : i32
    %c0_i32_1 = arith.constant 0 : i32
    return %c0_i32, %c0_i32_0 : i32, i32
  }
  func.func @transform_6(%arg0: i32) -> (i32, i32) {
    %c0_i32 = arith.constant 0 : i32
    %c0_i32_0 = arith.constant 0 : i32
    %c0_i32_1 = arith.constant 0 : i32
    return %c0_i32, %c0_i32_0 : i32, i32
  }
  func.func @transform_7(%arg0: i32) -> (i32, i32) {
    %c0_i32 = arith.constant 0 : i32
    %c0_i32_0 = arith.constant 0 : i32
    %c0_i32_1 = arith.constant 0 : i32
    return %c0_i32, %c0_i32_0 : i32, i32
  }
  func.func @transform_8(%arg0: i32) -> (i32, i32) {
    %c0_i32 = arith.constant 0 : i32
    %c0_i32_0 = arith.constant 0 : i32
    %c0_i32_1 = arith.constant 0 : i32
    return %c0_i32, %c0_i32_0 : i32, i32
  }
  func.func @transform_9(%arg0: i32) -> (i32, i32) {
    %c0_i32 = arith.constant 0 : i32
    %c0_i32_0 = arith.constant 0 : i32
    %c0_i32_1 = arith.constant 0 : i32
    return %c0_i32, %c0_i32_0 : i32, i32
  }
  func.func @transform_10(%arg0: i32) -> (i32, i32) {
    %c0_i32 = arith.constant 0 : i32
    %c0_i32_0 = arith.constant 0 : i32
    %c0_i32_1 = arith.constant 0 : i32
    return %c0_i32, %c0_i32_0 : i32, i32
  }
  func.func @transform_11(%arg0: i32) -> (i32, i32) {
    %c0_i32 = arith.constant 0 : i32
    %c0_i32_0 = arith.constant 0 : i32
    %c0_i32_1 = arith.constant 0 : i32
    return %c0_i32, %c0_i32_0 : i32, i32
  }
  func.func @transform_12(%arg0: i32) -> (i32, i32) {
    %c0_i32 = arith.constant 0 : i32
    %c0_i32_0 = arith.constant 0 : i32
    %c0_i32_1 = arith.constant 0 : i32
    return %c0_i32, %c0_i32_0 : i32, i32
  }
  func.func @transform_13(%arg0: i32) -> (i32, i32) {
    %c0_i32 = arith.constant 0 : i32
    %c0_i32_0 = arith.constant 0 : i32
    %c0_i32_1 = arith.constant 0 : i32
    return %c0_i32, %c0_i32_0 : i32, i32
  }
}

</mosaic_0001>

<llo_original>
// kernel: tpu_custom_call.1
$region0: #{tpu_custom_call.1}
  #allocation0 [shape = 'u32[]', space=smem, size = 0x4, offset = 0x4, fixed_abs, tag = 'smem constant byte address 0x4 - core index']
  #allocation1 [shape = 'u32[144,128]{1,0:T(1,128)}', space=vmem, size = 0x12000, scoped, tag = 'internal scratch']
  %s0 = inlined_call_operand.hbm [shape: f32[32,128], index: 0, kind: input, shape index: {}]
  %s1 = inlined_call_operand.hbm [shape: bf16[128,384], index: 1, kind: input, shape index: {}]
  %s2 = inlined_call_operand.vmem [shape: f32[1,384], index: 2, kind: input, shape index: {}]
  %s3 = inlined_call_operand.hbm [shape: bf16[128,128], index: 3, kind: input, shape index: {}]
  %s4 = inlined_call_operand.vmem [shape: f32[1,128], index: 4, kind: input, shape index: {}]
  %s5 = inlined_call_operand.vmem [shape: f32[1,128], index: 5, kind: input, shape index: {}]
  %s6 = inlined_call_operand.vmem [shape: f32[1,128], index: 6, kind: input, shape index: {}]
  %s7 = inlined_call_operand.hbm [shape: bf16[128,512], index: 7, kind: input, shape index: {}]
  %s8 = inlined_call_operand.vmem [shape: f32[1,512], index: 8, kind: input, shape index: {}]
  %s9 = inlined_call_operand.hbm [shape: bf16[512,128], index: 9, kind: input, shape index: {}]
  %s10 = inlined_call_operand.vmem [shape: f32[1,128], index: 10, kind: input, shape index: {}]
  %s11 = inlined_call_operand.vmem [shape: f32[1,128], index: 11, kind: input, shape index: {}]
  %s12 = inlined_call_operand.vmem [shape: f32[1,128], index: 12, kind: input, shape index: {}]
  %s13 = inlined_call_operand.hbm [shape: f32[32,128], index: 13, kind: output, shape index: {}]
  %s14 = sld [smem:[#allocation0]]
  $region82: #{tpu_custom_call.1} parent=0
    _
  %s16 = ssub.s32 1, %s14
  %s17 = scalar_select 0, %s16, %s14
  $region1: #{tpu_custom_call.1} parent=0
    #allocation2 [shape = 'u8[16384]{0}', space=vmem, size = 0x4000, scoped, tag = 'input window, operand 0, single buffered']
    #allocation3 [shape = 's32[1]{0}', space=sflag, size = 0x4, scoped, tag = 'scoped memory for tpu_custom_call.1']
    #allocation4 [shape = 's32[1]{0}', space=sflag, size = 0x4, scoped, tag = 'scoped memory for tpu_custom_call.1']
    #allocation5 [shape = 'u8[98304]{0}', space=vmem, size = 0x18000, scoped, tag = 'input window, operand 1, single buffered']
    #allocation6 [shape = 's32[1]{0}', space=sflag, size = 0x4, scoped, tag = 'scoped memory for tpu_custom_call.1']
    #allocation7 [shape = 'u8[32768]{0}', space=vmem, size = 0x8000, scoped, tag = 'input window, operand 3, single buffered']
    #allocation8 [shape = 'u8[131072]{0}', space=vmem, size = 0x20000, scoped, tag = 'input window, operand 7, single buffered']
    #allocation9 [shape = 's32[1]{0}', space=sflag, size = 0x4, scoped, tag = 'scoped memory for tpu_custom_call.1']
    #allocation10 [shape = 'u8[131072]{0}', space=vmem, size = 0x20000, scoped, tag = 'input window, operand 9, single buffered']
    #allocation11 [shape = 'u8[16384]{0}', space=vmem, size = 0x4000, scoped, tag = 'output window, operand 0, single buffered']
    %18 = vsyncpa [#allocation3], 0
    %19 = vsyncpa [#allocation6], 0
    %20 = vsyncpa [#allocation9], 0
    %21 = vsyncpa [#allocation4], 0
    // Predicated region
    $region2: #{tpu_custom_call.1} parent=1 // pred_check
      _
    $region3: #{tpu_custom_call.1} parent=1 // pred_check_branch
      %23 = sbr.rel (0) target = $region5
    $region4: #{tpu_custom_call.1} parent=1 // pred_region
      %s25 = ssub.s32 512, 512
      %26 = vsyncadd [#allocation3], %s25
      %s27 = sshll.u32 [#allocation2], 4
      %s28 = int_to_ptr.vmem [resolvable:$true] %s27
      %33 = dma.hbm_to_vmem [thread:$0]  %s0, 512, %s28, [#allocation3], 128, 128, 8
    $region5: #{tpu_custom_call.1} parent=1 // pred_fallthru
      _
    // Predicated region
    $region6: #{tpu_custom_call.1} parent=1 // pred_check
      _
    $region7: #{tpu_custom_call.1} parent=1 // pred_check_branch
      %35 = sbr.rel (0) target = $region9
    $region8: #{tpu_custom_call.1} parent=1 // pred_region
      %s37 = ssub.s32 3072, 3072
      %38 = vsyncadd [#allocation6], %s37
      %s39 = sshll.u32 [#allocation5], 4
      %s40 = int_to_ptr.vmem [resolvable:$true] %s39
      %45 = dma.hbm_to_vmem [thread:$0]  %s1, 3072, %s40, [#allocation6], 192, 192, 12
    $region9: #{tpu_custom_call.1} parent=1 // pred_fallthru
      _
    // Predicated region
    $region10: #{tpu_custom_call.1} parent=1 // pred_check
      _
    $region11: #{tpu_custom_call.1} parent=1 // pred_check_branch
      %47 = sbr.rel (0) target = $region13
    $region12: #{tpu_custom_call.1} parent=1 // pred_region
      _
    $region13: #{tpu_custom_call.1} parent=1 // pred_fallthru
      _
    // Predicated region
    $region14: #{tpu_custom_call.1} parent=1 // pred_check
      _
    $region15: #{tpu_custom_call.1} parent=1 // pred_check_branch
      %49 = sbr.rel (0) target = $region17
    $region16: #{tpu_custom_call.1} parent=1 // pred_region
      %s51 = ssub.s32 1024, 1024
      %52 = vsyncadd [#allocation6], %s51
      %s53 = sshll.u32 [#allocation7], 4
      %s54 = int_to_ptr.vmem [resolvable:$true] %s53
      %59 = dma.hbm_to_vmem [thread:$0]  %s3, 1024, %s54, [#allocation6], 64, 64, 4
    $region17: #{tpu_custom_call.1} parent=1 // pred_fallthru
      _
    // Predicated region
    $region18: #{tpu_custom_call.1} parent=1 // pred_check
      _
    $region19: #{tpu_custom_call.1} parent=1 // pred_check_branch
      %61 = sbr.rel (0) target = $region21
    $region20: #{tpu_custom_call.1} parent=1 // pred_region
      _
    $region21: #{tpu_custom_call.1} parent=1 // pred_fallthru
      _
    // Predicated region
    $region22: #{tpu_custom_call.1} parent=1 // pred_check
      _
    $region23: #{tpu_custom_call.1} parent=1 // pred_check_branch
      %63 = sbr.rel (0) target = $region25
    $region24: #{tpu_custom_call.1} parent=1 // pred_region
      _
    $region25: #{tpu_custom_call.1} parent=1 // pred_fallthru
      _
    // Predicated region
    $region26: #{tpu_custom_call.1} parent=1 // pred_check
      _
    $region27: #{tpu_custom_call.1} parent=1 // pred_check_branch
      %65 = sbr.rel (0) target = $region29
    $region28: #{tpu_custom_call.1} parent=1 // pred_region
      _
    $region29: #{tpu_custom_call.1} parent=1 // pred_fallthru
      _
    // Predicated region
    $region30: #{tpu_custom_call.1} parent=1 // pred_check
      _
    $region31: #{tpu_custom_call.1} parent=1 // pred_check_branch
      %67 = sbr.rel (0) target = $region33
    $region32: #{tpu_custom_call.1} parent=1 // pred_region
      %s69 = ssub.s32 4096, 4096
      %70 = vsyncadd [#allocation9], %s69
      %s71 = sshll.u32 [#allocation8], 4
      %s72 = int_to_ptr.vmem [resolvable:$true] %s71
      %77 = dma.hbm_to_vmem [thread:$0]  %s7, 4096, %s72, [#allocation9], 256, 256, 16
    $region33: #{tpu_custom_call.1} parent=1 // pred_fallthru
      _
    // Predicated region
    $region34: #{tpu_custom_call.1} parent=1 // pred_check
      _
    $region35: #{tpu_custom_call.1} parent=1 // pred_check_branch
      %79 = sbr.rel (0) target = $region37
    $region36: #{tpu_custom_call.1} parent=1 // pred_region
      _
    $region37: #{tpu_custom_call.1} parent=1 // pred_fallthru
      _
    // Predicated region
    $region38: #{tpu_custom_call.1} parent=1 // pred_check
      _
    $region39: #{tpu_custom_call.1} parent=1 // pred_check_branch
      %81 = sbr.rel (0) target = $region41
    $region40: #{tpu_custom_call.1} parent=1 // pred_region
      %s83 = ssub.s32 4096, 4096
      %84 = vsyncadd [#allocation9], %s83
      %s85 = sshll.u32 [#allocation10], 4
      %s86 = int_to_ptr.vmem [resolvable:$true] %s85
      %91 = dma.hbm_to_vmem [thread:$0]  %s9, 4096, %s86, [#allocation9], 64, 64, 4
    $region41: #{tpu_custom_call.1} parent=1 // pred_fallthru
      _
    // Predicated region
    $region42: #{tpu_custom_call.1} parent=1 // pred_check
      _
    $region43: #{tpu_custom_call.1} parent=1 // pred_check_branch
      %93 = sbr.rel (0) target = $region45
    $region44: #{tpu_custom_call.1} parent=1 // pred_region
      _
    $region45: #{tpu_custom_call.1} parent=1 // pred_fallthru
      _
    // Predicated region
    $region46: #{tpu_custom_call.1} parent=1 // pred_check
      _
    $region47: #{tpu_custom_call.1} parent=1 // pred_check_branch
      %95 = sbr.rel (0) target = $region49
    $region48: #{tpu_custom_call.1} parent=1 // pred_region
      _
    $region49: #{tpu_custom_call.1} parent=1 // pred_fallthru
      _
    // Predicated region
    $region50: #{tpu_custom_call.1} parent=1 // pred_check
      _
    $region51: #{tpu_custom_call.1} parent=1 // pred_check_branch
      %97 = sbr.rel (0) target = $region53
    $region52: #{tpu_custom_call.1} parent=1 // pred_region
      _
    $region53: #{tpu_custom_call.1} parent=1 // pred_fallthru
      _
    // Predicated region
    $region54: #{tpu_custom_call.1} parent=1 // pred_check
      _
    $region55: #{tpu_custom_call.1} parent=1 // pred_check_branch
      %99 = sbr.rel (0) target = $region57
    $region56: #{tpu_custom_call.1} parent=1 // pred_region
      %100 = dma.done [#allocation3], 512
    $region57: #{tpu_custom_call.1} parent=1 // pred_fallthru
      _
    // Predicated region
    $region58: #{tpu_custom_call.1} parent=1 // pred_check
      _
    $region59: #{tpu_custom_call.1} parent=1 // pred_check_branch
      %102 = sbr.rel (0) target = $region61
    $region60: #{tpu_custom_call.1} parent=1 // pred_region
      %103 = dma.done [#allocation6], 3072
    $region61: #{tpu_custom_call.1} parent=1 // pred_fallthru
      _
    // Predicated region
    $region62: #{tpu_custom_call.1} parent=1 // pred_check
      _
    $region63: #{tpu_custom_call.1} parent=1 // pred_check_branch
      %105 = sbr.rel (0) target = $region65
    $region64: #{tpu_custom_call.1} parent=1 // pred_region
      %106 = dma.done [#allocation6], 1024
    $region65: #{tpu_custom_call.1} parent=1 // pred_fallthru
      _
    // Predicated region
    $region66: #{tpu_custom_call.1} parent=1 // pred_check
      _
    $region67: #{tpu_custom_call.1} parent=1 // pred_check_branch
      %108 = sbr.rel (0) target = $region69
    $region68: #{tpu_custom_call.1} parent=1 // pred_region
      %109 = dma.done [#allocation9], 4096
    $region69: #{tpu_custom_call.1} parent=1 // pred_fallthru
      _
    // Predicated region
    $region70: #{tpu_custom_call.1} parent=1 // pred_check
      _
    $region71: #{tpu_custom_call.1} parent=1 // pred_check_branch
      %111 = sbr.rel (0) target = $region73
    $region72: #{tpu_custom_call.1} parent=1 // pred_region
      %112 = dma.done [#allocation9], 4096
    $region73: #{tpu_custom_call.1} parent=1 // pred_fallthru
      _
    %v114 = vld [vmem:[#allocation2] sm:$0xff]
    %v115 = vld [vmem:[#allocation2 + $0x8] sm:$0xff]
    %v116 = vld [vmem:[#allocation2 + $0x10] sm:$0xff]
    %v117 = vld [vmem:[#allocation2 + $0x18] sm:$0xff]
    %v118 = vpack.c.bf16 %v115, %v114
    %v119 = vpack.c.bf16 %v117, %v116
    %v120 = vld [vmem:[#allocation5] sm:$0xff]
    %v121 = vld [vmem:[#allocation5 + $0x8] sm:$0xf]
    %v122 = vld [vmem:[#allocation5 + $0xc] sm:$0xff]
    %v123 = vld [vmem:[#allocation5 + $0x14] sm:$0xf]
    %v124 = vld [vmem:[#allocation5 + $0x18] sm:$0xff]
    %v125 = vld [vmem:[#allocation5 + $0x20] sm:$0xf]
    %v126 = vld [vmem:[#allocation5 + $0x24] sm:$0xff]
    %v127 = vld [vmem:[#allocation5 + $0x2c] sm:$0xf]
    %v128 = vld [vmem:[#allocation5 + $0x30] sm:$0xff]
    %v129 = vld [vmem:[#allocation5 + $0x38] sm:$0xf]
    %v130 = vld [vmem:[#allocation5 + $0x3c] sm:$0xff]
    %v131 = vld [vmem:[#allocation5 + $0x44] sm:$0xf]
    %v132 = vld [vmem:[#allocation5 + $0x48] sm:$0xff]
    %v133 = vld [vmem:[#allocation5 + $0x50] sm:$0xf]
    %v134 = vld [vmem:[#allocation5 + $0x54] sm:$0xff]
    %v135 = vld [vmem:[#allocation5 + $0x5c] sm:$0xf]
    %v136 = vld [vmem:[#allocation5 + $0x60] sm:$0xff]
    %v137 = vld [vmem:[#allocation5 + $0x68] sm:$0xf]
    %v138 = vld [vmem:[#allocation5 + $0x6c] sm:$0xff]
    %v139 = vld [vmem:[#allocation5 + $0x74] sm:$0xf]
    %v140 = vld [vmem:[#allocation5 + $0x78] sm:$0xff]
    %v141 = vld [vmem:[#allocation5 + $0x80] sm:$0xf]
    %v142 = vld [vmem:[#allocation5 + $0x84] sm:$0xff]
    %v143 = vld [vmem:[#allocation5 + $0x8c] sm:$0xf]
    %v144 = vld [vmem:[#allocation5 + $0x90] sm:$0xff]
    %v145 = vld [vmem:[#allocation5 + $0x98] sm:$0xf]
    %v146 = vld [vmem:[#allocation5 + $0x9c] sm:$0xff]
    %v147 = vld [vmem:[#allocation5 + $0xa4] sm:$0xf]
    %v148 = vld [vmem:[#allocation5 + $0xa8] sm:$0xff]
    %v149 = vld [vmem:[#allocation5 + $0xb0] sm:$0xf]
    %v150 = vld [vmem:[#allocation5 + $0xb4] sm:$0xff]
    %v151 = vld [vmem:[#allocation5 + $0xbc] sm:$0xf]
    %v152 = vld [vmem:[%s2] sm:$0x7]
    %v154 = vlaneseq
    %v155 = vshrl.u32 %v154, 7
    %v156 = vsub.s32 0, %v155
    %v157 = vrot.slane %v152, %v156
    %v158 = vlaneseq
    %v159 = vshrl.u32 %v158, 7
    %v160 = vsub.s32 1, %v159
    %v161 = vrot.slane %v152, %v160
    %v162 = vlaneseq
    %v163 = vshrl.u32 %v162, 7
    %v164 = vsub.s32 2, %v163
    %v165 = vrot.slane %v152, %v164
    %v201 = vunpack.c.l.b16 %v120
    %v202 = vunpack.c.h.b16 %v120
    %v203 = vunpack.c.l.b16 %v121
    %v204 = vunpack.c.l.b16 %v122
    %v205 = vunpack.c.h.b16 %v122
    %v206 = vunpack.c.l.b16 %v123
    %v207 = vunpack.c.l.b16 %v124
    %v208 = vunpack.c.h.b16 %v124
    %v209 = vunpack.c.l.b16 %v125
    %v210 = vunpack.c.l.b16 %v126
    %v211 = vunpack.c.h.b16 %v126
    %v212 = vunpack.c.l.b16 %v127
    %v213 = vunpack.c.l.b16 %v128
    %v214 = vunpack.c.h.b16 %v128
    %v215 = vunpack.c.l.b16 %v129
    %v216 = vunpack.c.l.b16 %v130
    %v217 = vunpack.c.h.b16 %v130
    %v218 = vunpack.c.l.b16 %v131
    %v219 = vunpack.c.l.b16 %v132
    %v220 = vunpack.c.h.b16 %v132
    %v221 = vunpack.c.l.b16 %v133
    %v222 = vunpack.c.l.b16 %v134
    %v223 = vunpack.c.h.b16 %v134
    %v224 = vunpack.c.l.b16 %v135
    %v225 = vunpack.c.l.b16 %v136
    %v226 = vunpack.c.h.b16 %v136
    %v227 = vunpack.c.l.b16 %v137
    %v228 = vunpack.c.l.b16 %v138
    %v229 = vunpack.c.h.b16 %v138
    %v230 = vunpack.c.l.b16 %v139
    %v231 = vunpack.c.l.b16 %v140
    %v232 = vunpack.c.h.b16 %v140
    %v233 = vunpack.c.l.b16 %v141
    %v234 = vunpack.c.l.b16 %v142
    %v235 = vunpack.c.h.b16 %v142
    %v236 = vunpack.c.l.b16 %v143
    %v237 = vunpack.c.l.b16 %v144
    %v238 = vunpack.c.h.b16 %v144
    %v239 = vunpack.c.l.b16 %v145
    %v240 = vunpack.c.l.b16 %v146
    %v241 = vunpack.c.h.b16 %v146
    %v242 = vunpack.c.l.b16 %v147
    %v243 = vunpack.c.l.b16 %v148
    %v244 = vunpack.c.h.b16 %v148
    %v245 = vunpack.c.l.b16 %v149
    %v246 = vunpack.c.l.b16 %v150
    %v247 = vunpack.c.h.b16 %v150
    %v248 = vunpack.c.l.b16 %v151
    %v249 = vpack.c.b16 %v204, %v201
    %v250 = vpack.c.b16 %v205, %v202
    %v251 = vpack.c.b16 %v206, %v203
    %v252 = vpack.c.b16 %v210, %v207
    %v253 = vpack.c.b16 %v211, %v208
    %v254 = vpack.c.b16 %v212, %v209
    %v255 = vpack.c.b16 %v216, %v213
    %v256 = vpack.c.b16 %v217, %v214
    %v257 = vpack.c.b16 %v218, %v215
    %v258 = vpack.c.b16 %v222, %v219
    %v259 = vpack.c.b16 %v223, %v220
    %v260 = vpack.c.b16 %v224, %v221
    %v261 = vpack.c.b16 %v228, %v225
    %v262 = vpack.c.b16 %v229, %v226
    %v263 = vpack.c.b16 %v230, %v227
    %v264 = vpack.c.b16 %v234, %v231
    %v265 = vpack.c.b16 %v235, %v232
    %v266 = vpack.c.b16 %v236, %v233
    %v267 = vpack.c.b16 %v240, %v237
    %v268 = vpack.c.b16 %v241, %v238
    %v269 = vpack.c.b16 %v242, %v239
    %v270 = vpack.c.b16 %v246, %v243
    %v271 = vpack.c.b16 %v247, %v244
    %v272 = vpack.c.b16 %v248, %v245
    %297 = vmatprep.subr.bf16.mxu0 %v250
    %298 = vmatpush1.bf16.msra.mxu0 %v249
    %299 = vmatprep.subr.bf16.mxu0 %v253
    %300 = vmatpush1.bf16.msra.mxu0 %v252
    %301 = vmatprep.subr.bf16.mxu0 %v256
    %302 = vmatpush1.bf16.msra.mxu0 %v255
    %303 = vmatprep.subr.bf16.mxu0 %v259
    %304 = vmatpush1.bf16.msra.mxu0 %v258
    %305 = vmatprep.subr.bf16.mxu0 %v262
    %306 = vmatpush1.bf16.msra.mxu0 %v261
    %307 = vmatprep.subr.bf16.mxu0 %v265
    %308 = vmatpush1.bf16.msra.mxu0 %v264
    %309 = vmatprep.subr.bf16.mxu0 %v268
    %310 = vmatpush1.bf16.msra.mxu0 %v267
    %311 = vmatprep.subr.bf16.mxu0 %v271
    %312 = vmatpush1.bf16.msra.mxu0 %v270
    %313 = vmatprep.subr.bf16.mxu0 0
    %314 = vmatpush1.bf16.msra.mxu0 0
    %315 = vmatprep.subr.bf16.mxu0 0
    %316 = vmatpush1.bf16.msra.mxu0 0
    %317 = vmatprep.subr.bf16.mxu0 0
    %318 = vmatpush1.bf16.msra.mxu0 0
    %319 = vmatprep.subr.bf16.mxu0 0
    %320 = vmatpush1.bf16.msra.mxu0 0
    %321 = vmatprep.subr.bf16.mxu0 0
    %322 = vmatpush1.bf16.msra.mxu0 0
    %323 = vmatprep.subr.bf16.mxu0 0
    %324 = vmatpush1.bf16.msra.mxu0 0
    %325 = vmatprep.subr.bf16.mxu0 0
    %326 = vmatpush1.bf16.msra.mxu0 0
    %327 = vmatprep.subr.bf16.mxu0 0
    %328 = vmatpush1.bf16.msra.mxu0 0
    %329 = vmatprep.mubr.bf16.mxu0 0
    %330 = vmatmul.mubr.bf16.gmra.mrb[0].mxu0 %v118
    %v331 = vpop.f32.mrb[0].mxu0
    %v332 = vadd.f32 %v157, %v331
    %v333 = vpop.f32.mrb[0].mxu0
    %v334 = vadd.f32 %v161, %v333
    %v335 = vpop.f32.mrb[0].mxu0
    %v336 = vadd.f32 %v157, %v335
    %v337 = vpop.f32.mrb[0].mxu0
    %v338 = vadd.f32 %v161, %v337
    %339 = vmatprep.mubr.bf16.mxu0 0
    %340 = vmatmul.mubr.bf16.gmra.mrb[0].mxu0 %v119
    %v341 = vpop.f32.mrb[0].mxu0
    %v342 = vadd.f32 %v157, %v341
    %v343 = vpop.f32.mrb[0].mxu0
    %v344 = vadd.f32 %v161, %v343
    %v345 = vpop.f32.mrb[0].mxu0
    %v346 = vadd.f32 %v157, %v345
    %v347 = vpop.f32.mrb[0].mxu0
    %v348 = vadd.f32 %v161, %v347
    %349 = vdwg.mxu0
    %350 = vmatprep.subr.bf16.mxu0 0
    %351 = vmatpush1.bf16.msra.mxu0 %v251
    %352 = vmatprep.subr.bf16.mxu0 0
    %353 = vmatpush1.bf16.msra.mxu0 %v254
    %354 = vmatprep.subr.bf16.mxu0 0
    %355 = vmatpush1.bf16.msra.mxu0 %v257
    %356 = vmatprep.subr.bf16.mxu0 0
    %357 = vmatpush1.bf16.msra.mxu0 %v260
    %358 = vmatprep.subr.bf16.mxu0 0
    %359 = vmatpush1.bf16.msra.mxu0 %v263
    %360 = vmatprep.subr.bf16.mxu0 0
    %361 = vmatpush1.bf16.msra.mxu0 %v266
    %362 = vmatprep.subr.bf16.mxu0 0
    %363 = vmatpush1.bf16.msra.mxu0 %v269
    %364 = vmatprep.subr.bf16.mxu0 0
    %365 = vmatpush1.bf16.msra.mxu0 %v272
    %366 = vmatprep.subr.bf16.mxu0 0
    %367 = vmatpush1.bf16.msra.mxu0 0
    %368 = vmatprep.subr.bf16.mxu0 0
    %369 = vmatpush1.bf16.msra.mxu0 0
    %370 = vmatprep.subr.bf16.mxu0 0
    %371 = vmatpush1.bf16.msra.mxu0 0
    %372 = vmatprep.subr.bf16.mxu0 0
    %373 = vmatpush1.bf16.msra.mxu0 0
    %374 = vmatprep.subr.bf16.mxu0 0
    %375 = vmatpush1.bf16.msra.mxu0 0
    %376 = vmatprep.subr.bf16.mxu0 0
    %377 = vmatpush1.bf16.msra.mxu0 0
    %378 = vmatprep.subr.bf16.mxu0 0
    %379 = vmatpush1.bf16.msra.mxu0 0
    %380 = vmatprep.subr.bf16.mxu0 0
    %381 = vmatpush1.bf16.msra.mxu0 0
    %382 = vmatprep.mubr.bf16.mxu0 0
    %383 = vmatmul.mubr.bf16.gmra.mrb[0].mxu0 %v118
    %v384 = vpop.f32.mrb[0].mxu0
    %v385 = vadd.f32 %v165, %v384
    %v386 = vpop.f32.mrb[0].mxu0
    %v387 = vpop.f32.mrb[0].mxu0
    %v388 = vadd.f32 %v165, %v387
    %v389 = vpop.f32.mrb[0].mxu0
    %390 = vmatprep.mubr.bf16.mxu0 0
    %391 = vmatmul.mubr.bf16.gmra.mrb[0].mxu0 %v119
    %v392 = vpop.f32.mrb[0].mxu0
    %v393 = vadd.f32 %v165, %v392
    %v394 = vpop.f32.mrb[0].mxu0
    %v395 = vpop.f32.mrb[0].mxu0
    %v396 = vadd.f32 %v165, %v395
    %v397 = vpop.f32.mrb[0].mxu0
    %398 = vdwg.mxu0
    %v399 = vpack.c.bf16 %v336, %v332
    %v400 = vpack.c.bf16 %v346, %v342
    %403 = vrot.lane.b32.xlu0 %v399, 96
    %v404 = vpop.permute.xlu0 %403
    %405 = vrot.lane.b32.xlu0 %v400, 96
    %v406 = vpop.permute.xlu0 %405
    %407 = vrot.lane.b32.xlu0 %v399, 64
    %v408 = vpop.permute.xlu0 %407
    %409 = vrot.lane.b32.xlu0 %v400, 64
    %v410 = vpop.permute.xlu0 %409
    %411 = vrot.lane.b32.xlu0 %v399, 32
    %v412 = vpop.permute.xlu0 %411
    %413 = vrot.lane.b32.xlu0 %v400, 32
    %v414 = vpop.permute.xlu0 %413
    %v415 = vpack.c.bf16 %v338, %v334
    %v416 = vpack.c.bf16 %v348, %v344
    %419 = vrot.lane.b32.xlu0 %v415, 96
    %v420 = vpop.permute.xlu0 %419
    %421 = vrot.lane.b32.xlu0 %v416, 96
    %v422 = vpop.permute.xlu0 %421
    %423 = vrot.lane.b32.xlu0 %v415, 64
    %v424 = vpop.permute.xlu0 %423
    %425 = vrot.lane.b32.xlu0 %v416, 64
    %v426 = vpop.permute.xlu0 %425
    %427 = vrot.lane.b32.xlu0 %v415, 32
    %v428 = vpop.permute.xlu0 %427
    %429 = vrot.lane.b32.xlu0 %v416, 32
    %v430 = vpop.permute.xlu0 %429
    %v431 = vpack.c.bf16 %v388, %v385
    %v432 = vpack.c.bf16 %v396, %v393
    %435 = vrot.lane.b32.xlu0 %v431, 96
    %v436 = vpop.permute.xlu0 %435
    %437 = vrot.lane.b32.xlu0 %v432, 96
    %v438 = vpop.permute.xlu0 %437
    %441 = vrot.lane.b32.xlu0 %v431, 64
    %v442 = vpop.permute.xlu0 %441
    %443 = vrot.lane.b32.xlu0 %v432, 64
    %v444 = vpop.permute.xlu0 %443
    %447 = vrot.lane.b32.xlu0 %v431, 32
    %v448 = vpop.permute.xlu0 %447
    %449 = vrot.lane.b32.xlu0 %v432, 32
    %v450 = vpop.permute.xlu0 %449
    %vm453 = vcmask 261120
    %v455 = vsel %vm453, %v399, 0
    %v458 = vsel %vm453, %v415, 0
    %460 = vmatprep.subr.bf16.mxu0 0
    %461 = vmatpush1.bf16.xpose.msra.mxu0 %v458
    %462 = vmatprep.subr.bf16.mxu0 0
    %463 = vmatpush1.bf16.xpose.msra.mxu0 0
    %464 = vmatprep.subr.bf16.mxu0 0
    %465 = vmatpush1.bf16.xpose.msra.mxu0 0
    %466 = vmatprep.subr.bf16.mxu0 0
    %467 = vmatpush1.bf16.xpose.msra.mxu0 0
    %468 = vmatprep.subr.bf16.mxu0 0
    %469 = vmatpush1.bf16.xpose.msra.mxu0 0
    %470 = vmatprep.subr.bf16.mxu0 0
    %471 = vmatpush1.bf16.xpose.msra.mxu0 0
    %472 = vmatprep.subr.bf16.mxu0 0
    %473 = vmatpush1.bf16.xpose.msra.mxu0 0
    %474 = vmatprep.subr.bf16.mxu0 0
    %475 = vmatpush1.bf16.xpose.msra.mxu0 0
    %476 = vmatprep.subr.bf16.mxu0 0
    %477 = vmatpush1.bf16.xpose.msra.mxu0 0
    %478 = vmatprep.subr.bf16.mxu0 0
    %479 = vmatpush1.bf16.xpose.msra.mxu0 0
    %480 = vmatprep.subr.bf16.mxu0 0
    %481 = vmatpush1.bf16.xpose.msra.mxu0 0
    %482 = vmatprep.subr.bf16.mxu0 0
    %483 = vmatpush1.bf16.xpose.msra.mxu0 0
    %484 = vmatprep.subr.bf16.mxu0 0
    %485 = vmatpush1.bf16.xpose.msra.mxu0 0
    %486 = vmatprep.subr.bf16.mxu0 0
    %487 = vmatpush1.bf16.xpose.msra.mxu0 0
    %488 = vmatprep.subr.bf16.mxu0 0
    %489 = vmatpush1.bf16.xpose.msra.mxu0 0
    %490 = vmatprep.subr.bf16.mxu0 0
    %491 = vmatpush1.bf16.xpose.msra.mxu0 0
    %492 = vmatprep.mubr.bf16.mxu0 0
    %493 = vmatmul.mubr.bf16.gmra.mrb[0].mxu0 %v455
    %v494 = vpop.f32.mrb[0].mxu0
    %v495 = vadd.f32 0.0, %v494
    %v496 = vpop.f32.mrb[0].mxu0
    %v497 = vpop.f32.mrb[0].mxu0
    %v498 = vadd.f32 0.0, %v497
    %v499 = vpop.f32.mrb[0].mxu0
    %500 = vdwg.mxu0
    %v502 = vsel %vm453, %v404, 0
    %v505 = vsel %vm453, %v420, 0
    %507 = vmatprep.subr.bf16.mxu0 0
    %508 = vmatpush1.bf16.xpose.msra.mxu0 %v505
    %509 = vmatprep.subr.bf16.mxu0 0
    %510 = vmatpush1.bf16.xpose.msra.mxu0 0
    %511 = vmatprep.subr.bf16.mxu0 0
    %512 = vmatpush1.bf16.xpose.msra.mxu0 0
    %513 = vmatprep.subr.bf16.mxu0 0
    %514 = vmatpush1.bf16.xpose.msra.mxu0 0
    %515 = vmatprep.subr.bf16.mxu0 0
    %516 = vmatpush1.bf16.xpose.msra.mxu0 0
    %517 = vmatprep.subr.bf16.mxu0 0
    %518 = vmatpush1.bf16.xpose.msra.mxu0 0
    %519 = vmatprep.subr.bf16.mxu0 0
    %520 = vmatpush1.bf16.xpose.msra.mxu0 0
    %521 = vmatprep.subr.bf16.mxu0 0
    %522 = vmatpush1.bf16.xpose.msra.mxu0 0
    %523 = vmatprep.subr.bf16.mxu0 0
    %524 = vmatpush1.bf16.xpose.msra.mxu0 0
    %525 = vmatprep.subr.bf16.mxu0 0
    %526 = vmatpush1.bf16.xpose.msra.mxu0 0
    %527 = vmatprep.subr.bf16.mxu0 0
    %528 = vmatpush1.bf16.xpose.msra.mxu0 0
    %529 = vmatprep.subr.bf16.mxu0 0
    %530 = vmatpush1.bf16.xpose.msra.mxu0 0
    %531 = vmatprep.subr.bf16.mxu0 0
    %532 = vmatpush1.bf16.xpose.msra.mxu0 0
    %533 = vmatprep.subr.bf16.mxu0 0
    %534 = vmatpush1.bf16.xpose.msra.mxu0 0
    %535 = vmatprep.subr.bf16.mxu0 0
    %536 = vmatpush1.bf16.xpose.msra.mxu0 0
    %537 = vmatprep.subr.bf16.mxu0 0
    %538 = vmatpush1.bf16.xpose.msra.mxu0 0
    %539 = vmatprep.mubr.bf16.mxu0 0
    %540 = vmatmul.mubr.bf16.gmra.mrb[0].mxu0 %v502
    %v541 = vpop.f32.mrb[0].mxu0
    %v542 = vadd.f32 0.0, %v541
    %v543 = vpop.f32.mrb[0].mxu0
    %v544 = vpop.f32.mrb[0].mxu0
    %v545 = vadd.f32 0.0, %v544
    %v546 = vpop.f32.mrb[0].mxu0
    %547 = vdwg.mxu0
    %v549 = vsel %vm453, %v408, 0
    %v552 = vsel %vm453, %v424, 0
    %554 = vmatprep.subr.bf16.mxu0 0
    %555 = vmatpush1.bf16.xpose.msra.mxu0 %v552
    %556 = vmatprep.subr.bf16.mxu0 0
    %557 = vmatpush1.bf16.xpose.msra.mxu0 0
    %558 = vmatprep.subr.bf16.mxu0 0
    %559 = vmatpush1.bf16.xpose.msra.mxu0 0
    %560 = vmatprep.subr.bf16.mxu0 0
    %561 = vmatpush1.bf16.xpose.msra.mxu0 0
    %562 = vmatprep.subr.bf16.mxu0 0
    %563 = vmatpush1.bf16.xpose.msra.mxu0 0
    %564 = vmatprep.subr.bf16.mxu0 0
    %565 = vmatpush1.bf16.xpose.msra.mxu0 0
    %566 = vmatprep.subr.bf16.mxu0 0
    %567 = vmatpush1.bf16.xpose.msra.mxu0 0
    %568 = vmatprep.subr.bf16.mxu0 0
    %569 = vmatpush1.bf16.xpose.msra.mxu0 0
    %570 = vmatprep.subr.bf16.mxu0 0
    %571 = vmatpush1.bf16.xpose.msra.mxu0 0
    %572 = vmatprep.subr.bf16.mxu0 0
    %573 = vmatpush1.bf16.xpose.msra.mxu0 0
    %574 = vmatprep.subr.bf16.mxu0 0
    %575 = vmatpush1.bf16.xpose.msra.mxu0 0
    %576 = vmatprep.subr.bf16.mxu0 0
    %577 = vmatpush1.bf16.xpose.msra.mxu0 0
    %578 = vmatprep.subr.bf16.mxu0 0
    %579 = vmatpush1.bf16.xpose.msra.mxu0 0
    %580 = vmatprep.subr.bf16.mxu0 0
    %581 = vmatpush1.bf16.xpose.msra.mxu0 0
    %582 = vmatprep.subr.bf16.mxu0 0
    %583 = vmatpush1.bf16.xpose.msra.mxu0 0
    %584 = vmatprep.subr.bf16.mxu0 0
    %585 = vmatpush1.bf16.xpose.msra.mxu0 0
    %586 = vmatprep.mubr.bf16.mxu0 0
    %587 = vmatmul.mubr.bf16.gmra.mrb[0].mxu0 %v549
    %v588 = vpop.f32.mrb[0].mxu0
    %v589 = vadd.f32 0.0, %v588
    %v590 = vpop.f32.mrb[0].mxu0
    %v591 = vpop.f32.mrb[0].mxu0
    %v592 = vadd.f32 0.0, %v591
    %v593 = vpop.f32.mrb[0].mxu0
    %594 = vdwg.mxu0
    %v596 = vsel %vm453, %v412, 0
    %v599 = vsel %vm453, %v428, 0
    %601 = vmatprep.subr.bf16.mxu0 0
    %602 = vmatpush1.bf16.xpose.msra.mxu0 %v599
    %603 = vmatprep.subr.bf16.mxu0 0
    %604 = vmatpush1.bf16.xpose.msra.mxu0 0
    %605 = vmatprep.subr.bf16.mxu0 0
    %606 = vmatpush1.bf16.xpose.msra.mxu0 0
    %607 = vmatprep.subr.bf16.mxu0 0
    %608 = vmatpush1.bf16.xpose.msra.mxu0 0
    %609 = vmatprep.subr.bf16.mxu0 0
    %610 = vmatpush1.bf16.xpose.msra.mxu0 0
    %611 = vmatprep.subr.bf16.mxu0 0
    %612 = vmatpush1.bf16.xpose.msra.mxu0 0
    %613 = vmatprep.subr.bf16.mxu0 0
    %614 = vmatpush1.bf16.xpose.msra.mxu0 0
    %615 = vmatprep.subr.bf16.mxu0 0
    %616 = vmatpush1.bf16.xpose.msra.mxu0 0
    %617 = vmatprep.subr.bf16.mxu0 0
    %618 = vmatpush1.bf16.xpose.msra.mxu0 0
    %619 = vmatprep.subr.bf16.mxu0 0
    %620 = vmatpush1.bf16.xpose.msra.mxu0 0
    %621 = vmatprep.subr.bf16.mxu0 0
    %622 = vmatpush1.bf16.xpose.msra.mxu0 0
    %623 = vmatprep.subr.bf16.mxu0 0
    %624 = vmatpush1.bf16.xpose.msra.mxu0 0
    %625 = vmatprep.subr.bf16.mxu0 0
    %626 = vmatpush1.bf16.xpose.msra.mxu0 0
    %627 = vmatprep.subr.bf16.mxu0 0
    %628 = vmatpush1.bf16.xpose.msra.mxu0 0
    %629 = vmatprep.subr.bf16.mxu0 0
    %630 = vmatpush1.bf16.xpose.msra.mxu0 0
    %631 = vmatprep.subr.bf16.mxu0 0
    %632 = vmatpush1.bf16.xpose.msra.mxu0 0
    %633 = vmatprep.mubr.bf16.mxu0 0
    %634 = vmatmul.mubr.bf16.gmra.mrb[0].mxu0 %v596
    %v635 = vpop.f32.mrb[0].mxu0
    %v636 = vadd.f32 0.0, %v635
    %v637 = vpop.f32.mrb[0].mxu0
    %v638 = vpop.f32.mrb[0].mxu0
    %v639 = vadd.f32 0.0, %v638
    %v640 = vpop.f32.mrb[0].mxu0
    %641 = vdwg.mxu0
    %v643 = vsel %vm453, %v400, 0
    %v646 = vsel %vm453, %v416, 0
    %648 = vmatprep.subr.bf16.mxu0 0
    %649 = vmatpush1.bf16.xpose.msra.mxu0 %v646
    %650 = vmatprep.subr.bf16.mxu0 0
    %651 = vmatpush1.bf16.xpose.msra.mxu0 0
    %652 = vmatprep.subr.bf16.mxu0 0
    %653 = vmatpush1.bf16.xpose.msra.mxu0 0
    %654 = vmatprep.subr.bf16.mxu0 0
    %655 = vmatpush1.bf16.xpose.msra.mxu0 0
    %656 = vmatprep.subr.bf16.mxu0 0
    %657 = vmatpush1.bf16.xpose.msra.mxu0 0
    %658 = vmatprep.subr.bf16.mxu0 0
    %659 = vmatpush1.bf16.xpose.msra.mxu0 0
    %660 = vmatprep.subr.bf16.mxu0 0
    %661 = vmatpush1.bf16.xpose.msra.mxu0 0
    %662 = vmatprep.subr.bf16.mxu0 0
    %663 = vmatpush1.bf16.xpose.msra.mxu0 0
    %664 = vmatprep.subr.bf16.mxu0 0
    %665 = vmatpush1.bf16.xpose.msra.mxu0 0
    %666 = vmatprep.subr.bf16.mxu0 0
    %667 = vmatpush1.bf16.xpose.msra.mxu0 0
    %668 = vmatprep.subr.bf16.mxu0 0
    %669 = vmatpush1.bf16.xpose.msra.mxu0 0
    %670 = vmatprep.subr.bf16.mxu0 0
    %671 = vmatpush1.bf16.xpose.msra.mxu0 0
    %672 = vmatprep.subr.bf16.mxu0 0
    %673 = vmatpush1.bf16.xpose.msra.mxu0 0
    %674 = vmatprep.subr.bf16.mxu0 0
    %675 = vmatpush1.bf16.xpose.msra.mxu0 0
    %676 = vmatprep.subr.bf16.mxu0 0
    %677 = vmatpush1.bf16.xpose.msra.mxu0 0
    %678 = vmatprep.subr.bf16.mxu0 0
    %679 = vmatpush1.bf16.xpose.msra.mxu0 0
    %680 = vmatprep.mubr.bf16.mxu0 0
    %681 = vmatmul.mubr.bf16.gmra.mrb[0].mxu0 %v643
    %v682 = vpop.f32.mrb[0].mxu0
    %v683 = vadd.f32 0.0, %v682
    %v684 = vpop.f32.mrb[0].mxu0
    %v685 = vpop.f32.mrb[0].mxu0
    %v686 = vadd.f32 0.0, %v685
    %v687 = vpop.f32.mrb[0].mxu0
    %688 = vdwg.mxu0
    %v690 = vsel %vm453, %v406, 0
    %v693 = vsel %vm453, %v422, 0
    %695 = vmatprep.subr.bf16.mxu0 0
    %696 = vmatpush1.bf16.xpose.msra.mxu0 %v693
    %697 = vmatprep.subr.bf16.mxu0 0
    %698 = vmatpush1.bf16.xpose.msra.mxu0 0
    %699 = vmatprep.subr.bf16.mxu0 0
    %700 = vmatpush1.bf16.xpose.msra.mxu0 0
    %701 = vmatprep.subr.bf16.mxu0 0
    %702 = vmatpush1.bf16.xpose.msra.mxu0 0
    %703 = vmatprep.subr.bf16.mxu0 0
    %704 = vmatpush1.bf16.xpose.msra.mxu0 0
    %705 = vmatprep.subr.bf16.mxu0 0
    %706 = vmatpush1.bf16.xpose.msra.mxu0 0
    %707 = vmatprep.subr.bf16.mxu0 0
    %708 = vmatpush1.bf16.xpose.msra.mxu0 0
    %709 = vmatprep.subr.bf16.mxu0 0
    %710 = vmatpush1.bf16.xpose.msra.mxu0 0
    %711 = vmatprep.subr.bf16.mxu0 0
    %712 = vmatpush1.bf16.xpose.msra.mxu0 0
    %713 = vmatprep.subr.bf16.mxu0 0
    %714 = vmatpush1.bf16.xpose.msra.mxu0 0
    %715 = vmatprep.subr.bf16.mxu0 0
    %716 = vmatpush1.bf16.xpose.msra.mxu0 0
    %717 = vmatprep.subr.bf16.mxu0 0
    %718 = vmatpush1.bf16.xpose.msra.mxu0 0
    %719 = vmatprep.subr.bf16.mxu0 0
    %720 = vmatpush1.bf16.xpose.msra.mxu0 0
    %721 = vmatprep.subr.bf16.mxu0 0
    %722 = vmatpush1.bf16.xpose.msra.mxu0 0
    %723 = vmatprep.subr.bf16.mxu0 0
    %724 = vmatpush1.bf16.xpose.msra.mxu0 0
    %725 = vmatprep.subr.bf16.mxu0 0
    %726 = vmatpush1.bf16.xpose.msra.mxu0 0
    %727 = vmatprep.mubr.bf16.mxu0 0
    %728 = vmatmul.mubr.bf16.gmra.mrb[0].mxu0 %v690
    %v729 = vpop.f32.mrb[0].mxu0
    %v730 = vadd.f32 0.0, %v729
    %v731 = vpop.f32.mrb[0].mxu0
    %v732 = vpop.f32.mrb[0].mxu0
    %v733 = vadd.f32 0.0, %v732
    %v734 = vpop.f32.mrb[0].mxu0
    %735 = vdwg.mxu0
    %v737 = vsel %vm453, %v410, 0
    %v740 = vsel %vm453, %v426, 0
    %742 = vmatprep.subr.bf16.mxu0 0
    %743 = vmatpush1.bf16.xpose.msra.mxu0 %v740
    %744 = vmatprep.subr.bf16.mxu0 0
    %745 = vmatpush1.bf16.xpose.msra.mxu0 0
    %746 = vmatprep.subr.bf16.mxu0 0
    %747 = vmatpush1.bf16.xpose.msra.mxu0 0
    %748 = vmatprep.subr.bf16.mxu0 0
    %749 = vmatpush1.bf16.xpose.msra.mxu0 0
    %750 = vmatprep.subr.bf16.mxu0 0
    %751 = vmatpush1.bf16.xpose.msra.mxu0 0
    %752 = vmatprep.subr.bf16.mxu0 0
    %753 = vmatpush1.bf16.xpose.msra.mxu0 0
    %754 = vmatprep.subr.bf16.mxu0 0
    %755 = vmatpush1.bf16.xpose.msra.mxu0 0
    %756 = vmatprep.subr.bf16.mxu0 0
    %757 = vmatpush1.bf16.xpose.msra.mxu0 0
    %758 = vmatprep.subr.bf16.mxu0 0
    %759 = vmatpush1.bf16.xpose.msra.mxu0 0
    %760 = vmatprep.subr.bf16.mxu0 0
    %761 = vmatpush1.bf16.xpose.msra.mxu0 0
    %762 = vmatprep.subr.bf16.mxu0 0
    %763 = vmatpush1.bf16.xpose.msra.mxu0 0
    %764 = vmatprep.subr.bf16.mxu0 0
    %765 = vmatpush1.bf16.xpose.msra.mxu0 0
    %766 = vmatprep.subr.bf16.mxu0 0
    %767 = vmatpush1.bf16.xpose.msra.mxu0 0
    %768 = vmatprep.subr.bf16.mxu0 0
    %769 = vmatpush1.bf16.xpose.msra.mxu0 0
    %770 = vmatprep.subr.bf16.mxu0 0
    %771 = vmatpush1.bf16.xpose.msra.mxu0 0
    %772 = vmatprep.subr.bf16.mxu0 0
    %773 = vmatpush1.bf16.xpose.msra.mxu0 0
    %774 = vmatprep.mubr.bf16.mxu0 0
    %775 = vmatmul.mubr.bf16.gmra.mrb[0].mxu0 %v737
    %v776 = vpop.f32.mrb[0].mxu0
    %v777 = vadd.f32 0.0, %v776
    %v778 = vpop.f32.mrb[0].mxu0
    %v779 = vpop.f32.mrb[0].mxu0
    %v780 = vadd.f32 0.0, %v779
    %v781 = vpop.f32.mrb[0].mxu0
    %782 = vdwg.mxu0
    %v784 = vsel %vm453, %v414, 0
    %v787 = vsel %vm453, %v430, 0
    %789 = vmatprep.subr.bf16.mxu0 0
    %790 = vmatpush1.bf16.xpose.msra.mxu0 %v787
    %791 = vmatprep.subr.bf16.mxu0 0
    %792 = vmatpush1.bf16.xpose.msra.mxu0 0
    %793 = vmatprep.subr.bf16.mxu0 0
    %794 = vmatpush1.bf16.xpose.msra.mxu0 0
    %795 = vmatprep.subr.bf16.mxu0 0
    %796 = vmatpush1.bf16.xpose.msra.mxu0 0
    %797 = vmatprep.subr.bf16.mxu0 0
    %798 = vmatpush1.bf16.xpose.msra.mxu0 0
    %799 = vmatprep.subr.bf16.mxu0 0
    %800 = vmatpush1.bf16.xpose.msra.mxu0 0
    %801 = vmatprep.subr.bf16.mxu0 0
    %802 = vmatpush1.bf16.xpose.msra.mxu0 0
    %803 = vmatprep.subr.bf16.mxu0 0
    %804 = vmatpush1.bf16.xpose.msra.mxu0 0
    %805 = vmatprep.subr.bf16.mxu0 0
    %806 = vmatpush1.bf16.xpose.msra.mxu0 0
    %807 = vmatprep.subr.bf16.mxu0 0
    %808 = vmatpush1.bf16.xpose.msra.mxu0 0
    %809 = vmatprep.subr.bf16.mxu0 0
    %810 = vmatpush1.bf16.xpose.msra.mxu0 0
    %811 = vmatprep.subr.bf16.mxu0 0
    %812 = vmatpush1.bf16.xpose.msra.mxu0 0
    %813 = vmatprep.subr.bf16.mxu0 0
    %814 = vmatpush1.bf16.xpose.msra.mxu0 0
    %815 = vmatprep.subr.bf16.mxu0 0
    %816 = vmatpush1.bf16.xpose.msra.mxu0 0
    %817 = vmatprep.subr.bf16.mxu0 0
    %818 = vmatpush1.bf16.xpose.msra.mxu0 0
    %819 = vmatprep.subr.bf16.mxu0 0
    %820 = vmatpush1.bf16.xpose.msra.mxu0 0
    %821 = vmatprep.mubr.bf16.mxu0 0
    %822 = vmatmul.mubr.bf16.gmra.mrb[0].mxu0 %v784
    %v823 = vpop.f32.mrb[0].mxu0
    %v824 = vadd.f32 0.0, %v823
    %v825 = vpop.f32.mrb[0].mxu0
    %v826 = vpop.f32.mrb[0].mxu0
    %v827 = vadd.f32 0.0, %v826
    %v828 = vpop.f32.mrb[0].mxu0
    %829 = vdwg.mxu0
    %v830 = vmul.f32 %v495, 0.17677669
    %v831 = vmul.f32 %v498, 0.17677669
    %v832 = vmul.f32 %v542, 0.17677669
    %v833 = vmul.f32 %v545, 0.17677669
    %v834 = vmul.f32 %v589, 0.17677669
    %v835 = vmul.f32 %v592, 0.17677669
    %v836 = vmul.f32 %v636, 0.17677669
    %v837 = vmul.f32 %v639, 0.17677669
    %v838 = vmul.f32 %v683, 0.17677669
    %v839 = vmul.f32 %v686, 0.17677669
    %v840 = vmul.f32 %v730, 0.17677669
    %v841 = vmul.f32 %v733, 0.17677669
    %v842 = vmul.f32 %v777, 0.17677669
    %v843 = vmul.f32 %v780, 0.17677669
    %v844 = vmul.f32 %v824, 0.17677669
    %v845 = vmul.f32 %v827, 0.17677669
    %vm846 = vcmask 130048
    %v847 = vsel %vm846, %v830, -inf
    %848 = vmax.xlane.f32.xlu0 %v847
    %v849 = vpop.xlane.xlu0 %848
    %v850 = vsel %vm846, %v831, -inf
    %851 = vmax.xlane.f32.xlu0 %v850
    %v852 = vpop.xlane.xlu0 %851
    %v853 = vsel %vm846, %v832, -inf
    %854 = vmax.xlane.f32.xlu0 %v853
    %v855 = vpop.xlane.xlu0 %854
    %v856 = vsel %vm846, %v833, -inf
    %857 = vmax.xlane.f32.xlu0 %v856
    %v858 = vpop.xlane.xlu0 %857
    %v859 = vsel %vm846, %v834, -inf
    %860 = vmax.xlane.f32.xlu0 %v859
    %v861 = vpop.xlane.xlu0 %860
    %v862 = vsel %vm846, %v835, -inf
    %863 = vmax.xlane.f32.xlu0 %v862
    %v864 = vpop.xlane.xlu0 %863
    %v865 = vsel %vm846, %v836, -inf
    %866 = vmax.xlane.f32.xlu0 %v865
    %v867 = vpop.xlane.xlu0 %866
    %v868 = vsel %vm846, %v837, -inf
    %869 = vmax.xlane.f32.xlu0 %v868
    %v870 = vpop.xlane.xlu0 %869
    %v871 = vsel %vm846, %v838, -inf
    %872 = vmax.xlane.f32.xlu0 %v871
    %v873 = vpop.xlane.xlu0 %872
    %v874 = vsel %vm846, %v839, -inf
    %875 = vmax.xlane.f32.xlu0 %v874
    %v876 = vpop.xlane.xlu0 %875
    %v877 = vsel %vm846, %v840, -inf
    %878 = vmax.xlane.f32.xlu0 %v877
    %v879 = vpop.xlane.xlu0 %878
    %v880 = vsel %vm846, %v841, -inf
    %881 = vmax.xlane.f32.xlu0 %v880
    %v882 = vpop.xlane.xlu0 %881
    %v883 = vsel %vm846, %v842, -inf
    %884 = vmax.xlane.f32.xlu0 %v883
    %v885 = vpop.xlane.xlu0 %884
    %v886 = vsel %vm846, %v843, -inf
    %887 = vmax.xlane.f32.xlu0 %v886
    %v888 = vpop.xlane.xlu0 %887
    %v889 = vsel %vm846, %v844, -inf
    %890 = vmax.xlane.f32.xlu0 %v889
    %v891 = vpop.xlane.xlu0 %890
    %v892 = vsel %vm846, %v845, -inf
    %893 = vmax.xlane.f32.xlu0 %v892
    %v894 = vpop.xlane.xlu0 %893
    %v895 = vsub.f32 %v830, %v849
    %v896 = vsub.f32 %v831, %v852
    %v897 = vsub.f32 %v832, %v855
    %v898 = vsub.f32 %v833, %v858
    %v899 = vsub.f32 %v834, %v861
    %v900 = vsub.f32 %v835, %v864
    %v901 = vsub.f32 %v836, %v867
    %v902 = vsub.f32 %v837, %v870
    %v903 = vsub.f32 %v838, %v873
    %v904 = vsub.f32 %v839, %v876
    %v905 = vsub.f32 %v840, %v879
    %v906 = vsub.f32 %v841, %v882
    %v907 = vsub.f32 %v842, %v885
    %v908 = vsub.f32 %v843, %v888
    %v909 = vsub.f32 %v844, %v891
    %v910 = vsub.f32 %v845, %v894
    %v911 = vmul.f32 %v895, 1.442695
    %v912 = vpow.pop %v911
    %v913 = vmul.f32 %v896, 1.442695
    %v914 = vpow.pop %v913
    %v915 = vmul.f32 %v897, 1.442695
    %v916 = vpow.pop %v915
    %v917 = vmul.f32 %v898, 1.442695
    %v918 = vpow.pop %v917
    %v919 = vmul.f32 %v899, 1.442695
    %v920 = vpow.pop %v919
    %v921 = vmul.f32 %v900, 1.442695
    %v922 = vpow.pop %v921
    %v923 = vmul.f32 %v901, 1.442695
    %v924 = vpow.pop %v923
    %v925 = vmul.f32 %v902, 1.442695
    %v926 = vpow.pop %v925
    %v927 = vmul.f32 %v903, 1.442695
    %v928 = vpow.pop %v927
    %v929 = vmul.f32 %v904, 1.442695
    %v930 = vpow.pop %v929
    %v931 = vmul.f32 %v905, 1.442695
    %v932 = vpow.pop %v931
    %v933 = vmul.f32 %v906, 1.442695
    %v934 = vpow.pop %v933
    %v935 = vmul.f32 %v907, 1.442695
    %v936 = vpow.pop %v935
    %v937 = vmul.f32 %v908, 1.442695
    %v938 = vpow.pop %v937
    %v939 = vmul.f32 %v909, 1.442695
    %v940 = vpow.pop %v939
    %v941 = vmul.f32 %v910, 1.442695
    %v942 = vpow.pop %v941
    %v943 = vsel %vm846, %v912, 0.0
    %944 = vadd.xlane.f32.xlu0 %v943
    %v945 = vpop.xlane.xlu0 %944
    %v946 = vsel %vm846, %v914, 0.0
    %947 = vadd.xlane.f32.xlu0 %v946
    %v948 = vpop.xlane.xlu0 %947
    %v949 = vsel %vm846, %v916, 0.0
    %950 = vadd.xlane.f32.xlu0 %v949
    %v951 = vpop.xlane.xlu0 %950
    %v952 = vsel %vm846, %v918, 0.0
    %953 = vadd.xlane.f32.xlu0 %v952
    %v954 = vpop.xlane.xlu0 %953
    %v955 = vsel %vm846, %v920, 0.0
    %956 = vadd.xlane.f32.xlu0 %v955
    %v957 = vpop.xlane.xlu0 %956
    %v958 = vsel %vm846, %v922, 0.0
    %959 = vadd.xlane.f32.xlu0 %v958
    %v960 = vpop.xlane.xlu0 %959
    %v961 = vsel %vm846, %v924, 0.0
    %962 = vadd.xlane.f32.xlu0 %v961
    %v963 = vpop.xlane.xlu0 %962
    %v964 = vsel %vm846, %v926, 0.0
    %965 = vadd.xlane.f32.xlu0 %v964
    %v966 = vpop.xlane.xlu0 %965
    %v967 = vsel %vm846, %v928, 0.0
    %968 = vadd.xlane.f32.xlu0 %v967
    %v969 = vpop.xlane.xlu0 %968
    %v970 = vsel %vm846, %v930, 0.0
    %971 = vadd.xlane.f32.xlu0 %v970
    %v972 = vpop.xlane.xlu0 %971
    %v973 = vsel %vm846, %v932, 0.0
    %974 = vadd.xlane.f32.xlu0 %v973
    %v975 = vpop.xlane.xlu0 %974
    %v976 = vsel %vm846, %v934, 0.0
    %977 = vadd.xlane.f32.xlu0 %v976
    %v978 = vpop.xlane.xlu0 %977
    %v979 = vsel %vm846, %v936, 0.0
    %980 = vadd.xlane.f32.xlu0 %v979
    %v981 = vpop.xlane.xlu0 %980
    %v982 = vsel %vm846, %v938, 0.0
    %983 = vadd.xlane.f32.xlu0 %v982
    %v984 = vpop.xlane.xlu0 %983
    %v985 = vsel %vm846, %v940, 0.0
    %986 = vadd.xlane.f32.xlu0 %v985
    %v987 = vpop.xlane.xlu0 %986
    %v988 = vsel %vm846, %v942, 0.0
    %989 = vadd.xlane.f32.xlu0 %v988
    %v990 = vpop.xlane.xlu0 %989
    %v991 = vrcp.pop %v945
    %v992 = vrcp.pop %v948
    %v993 = vrcp.pop %v951
    %v994 = vrcp.pop %v954
    %v995 = vrcp.pop %v957
    %v996 = vrcp.pop %v960
    %v997 = vrcp.pop %v963
    %v998 = vrcp.pop %v966
    %v999 = vrcp.pop %v969
    %v1000 = vrcp.pop %v972
    %v1001 = vrcp.pop %v975
    %v1002 = vrcp.pop %v978
    %v1003 = vrcp.pop %v981
    %v1004 = vrcp.pop %v984
    %v1005 = vrcp.pop %v987
    %v1006 = vrcp.pop %v990
    %v1007 = vmul.f32 %v912, %v991
    %v1008 = vmul.f32 %v914, %v992
    %v1009 = vmul.f32 %v916, %v993
    %v1010 = vmul.f32 %v918, %v994
    %v1011 = vmul.f32 %v920, %v995
    %v1012 = vmul.f32 %v922, %v996
    %v1013 = vmul.f32 %v924, %v997
    %v1014 = vmul.f32 %v926, %v998
    %v1015 = vmul.f32 %v928, %v999
    %v1016 = vmul.f32 %v930, %v1000
    %v1017 = vmul.f32 %v932, %v1001
    %v1018 = vmul.f32 %v934, %v1002
    %v1019 = vmul.f32 %v936, %v1003
    %v1020 = vmul.f32 %v938, %v1004
    %v1021 = vmul.f32 %v940, %v1005
    %v1022 = vmul.f32 %v942, %v1006
    %v1023 = vpack.c.bf16 %v1008, %v1007
    %v1024 = vpack.c.bf16 %v1010, %v1009
    %v1025 = vpack.c.bf16 %v1012, %v1011
    %v1026 = vpack.c.bf16 %v1014, %v1013
    %v1027 = vpack.c.bf16 %v1016, %v1015
    %v1028 = vpack.c.bf16 %v1018, %v1017
    %v1029 = vpack.c.bf16 %v1020, %v1019
    %v1030 = vpack.c.bf16 %v1022, %v1021
    %v1032 = vsel %vm846, %v1023, 0
    %1034 = vmatprep.subr.bf16.mxu0 0
    %1035 = vmatpush1.bf16.msra.mxu0 %v431
    %1036 = vmatprep.subr.bf16.mxu0 0
    %1037 = vmatpush1.bf16.msra.mxu0 0
    %1038 = vmatprep.subr.bf16.mxu0 0
    %1039 = vmatpush1.bf16.msra.mxu0 0
    %1040 = vmatprep.subr.bf16.mxu0 0
    %1041 = vmatpush1.bf16.msra.mxu0 0
    %1042 = vmatprep.subr.bf16.mxu0 0
    %1043 = vmatpush1.bf16.msra.mxu0 0
    %1044 = vmatprep.subr.bf16.mxu0 0
    %1045 = vmatpush1.bf16.msra.mxu0 0
    %1046 = vmatprep.subr.bf16.mxu0 0
    %1047 = vmatpush1.bf16.msra.mxu0 0
    %1048 = vmatprep.subr.bf16.mxu0 0
    %1049 = vmatpush1.bf16.msra.mxu0 0
    %1050 = vmatprep.subr.bf16.mxu0 0
    %1051 = vmatpush1.bf16.msra.mxu0 0
    %1052 = vmatprep.subr.bf16.mxu0 0
    %1053 = vmatpush1.bf16.msra.mxu0 0
    %1054 = vmatprep.subr.bf16.mxu0 0
    %1055 = vmatpush1.bf16.msra.mxu0 0
    %1056 = vmatprep.subr.bf16.mxu0 0
    %1057 = vmatpush1.bf16.msra.mxu0 0
    %1058 = vmatprep.subr.bf16.mxu0 0
    %1059 = vmatpush1.bf16.msra.mxu0 0
    %1060 = vmatprep.subr.bf16.mxu0 0
    %1061 = vmatpush1.bf16.msra.mxu0 0
    %1062 = vmatprep.subr.bf16.mxu0 0
    %1063 = vmatpush1.bf16.msra.mxu0 0
    %1064 = vmatprep.subr.bf16.mxu0 0
    %1065 = vmatpush1.bf16.msra.mxu0 0
    %1066 = vmatprep.mubr.bf16.mxu0 0
    %1067 = vmatmul.mubr.bf16.gmra.mrb[0].mxu0 %v1032
    %v1068 = vpop.f32.mrb[0].mxu0
    %v1069 = vadd.f32 0.0, %v1068
    %v1070 = vpop.f32.mrb[0].mxu0
    %v1071 = vpop.f32.mrb[0].mxu0
    %v1072 = vadd.f32 0.0, %v1071
    %v1073 = vpop.f32.mrb[0].mxu0
    %1074 = vdwg.mxu0
    %v1076 = vsel %vm846, %v1024, 0
    %1078 = vmatprep.subr.bf16.mxu0 0
    %1079 = vmatpush1.bf16.msra.mxu0 %v436
    %1080 = vmatprep.subr.bf16.mxu0 0
    %1081 = vmatpush1.bf16.msra.mxu0 0
    %1082 = vmatprep.subr.bf16.mxu0 0
    %1083 = vmatpush1.bf16.msra.mxu0 0
    %1084 = vmatprep.subr.bf16.mxu0 0
    %1085 = vmatpush1.bf16.msra.mxu0 0
    %1086 = vmatprep.subr.bf16.mxu0 0
    %1087 = vmatpush1.bf16.msra.mxu0 0
    %1088 = vmatprep.subr.bf16.mxu0 0
    %1089 = vmatpush1.bf16.msra.mxu0 0
    %1090 = vmatprep.subr.bf16.mxu0 0
    %1091 = vmatpush1.bf16.msra.mxu0 0
    %1092 = vmatprep.subr.bf16.mxu0 0
    %1093 = vmatpush1.bf16.msra.mxu0 0
    %1094 = vmatprep.subr.bf16.mxu0 0
    %1095 = vmatpush1.bf16.msra.mxu0 0
    %1096 = vmatprep.subr.bf16.mxu0 0
    %1097 = vmatpush1.bf16.msra.mxu0 0
    %1098 = vmatprep.subr.bf16.mxu0 0
    %1099 = vmatpush1.bf16.msra.mxu0 0
    %1100 = vmatprep.subr.bf16.mxu0 0
    %1101 = vmatpush1.bf16.msra.mxu0 0
    %1102 = vmatprep.subr.bf16.mxu0 0
    %1103 = vmatpush1.bf16.msra.mxu0 0
    %1104 = vmatprep.subr.bf16.mxu0 0
    %1105 = vmatpush1.bf16.msra.mxu0 0
    %1106 = vmatprep.subr.bf16.mxu0 0
    %1107 = vmatpush1.bf16.msra.mxu0 0
    %1108 = vmatprep.subr.bf16.mxu0 0
    %1109 = vmatpush1.bf16.msra.mxu0 0
    %1110 = vmatprep.mubr.bf16.mxu0 0
    %1111 = vmatmul.mubr.bf16.gmra.mrb[0].mxu0 %v1076
    %v1112 = vpop.f32.mrb[0].mxu0
    %v1113 = vadd.f32 0.0, %v1112
    %v1114 = vpop.f32.mrb[0].mxu0
    %v1115 = vpop.f32.mrb[0].mxu0
    %v1116 = vadd.f32 0.0, %v1115
    %v1117 = vpop.f32.mrb[0].mxu0
    %1118 = vdwg.mxu0
    %v1120 = vsel %vm846, %v1025, 0
    %1122 = vmatprep.subr.bf16.mxu0 0
    %1123 = vmatpush1.bf16.msra.mxu0 %v442
    %1124 = vmatprep.subr.bf16.mxu0 0
    %1125 = vmatpush1.bf16.msra.mxu0 0
    %1126 = vmatprep.subr.bf16.mxu0 0
    %1127 = vmatpush1.bf16.msra.mxu0 0
    %1128 = vmatprep.subr.bf16.mxu0 0
    %1129 = vmatpush1.bf16.msra.mxu0 0
    %1130 = vmatprep.subr.bf16.mxu0 0
    %1131 = vmatpush1.bf16.msra.mxu0 0
    %1132 = vmatprep.subr.bf16.mxu0 0
    %1133 = vmatpush1.bf16.msra.mxu0 0
    %1134 = vmatprep.subr.bf16.mxu0 0
    %1135 = vmatpush1.bf16.msra.mxu0 0
    %1136 = vmatprep.subr.bf16.mxu0 0
    %1137 = vmatpush1.bf16.msra.mxu0 0
    %1138 = vmatprep.subr.bf16.mxu0 0
    %1139 = vmatpush1.bf16.msra.mxu0 0
    %1140 = vmatprep.subr.bf16.mxu0 0
    %1141 = vmatpush1.bf16.msra.mxu0 0
    %1142 = vmatprep.subr.bf16.mxu0 0
    %1143 = vmatpush1.bf16.msra.mxu0 0
    %1144 = vmatprep.subr.bf16.mxu0 0
    %1145 = vmatpush1.bf16.msra.mxu0 0
    %1146 = vmatprep.subr.bf16.mxu0 0
    %1147 = vmatpush1.bf16.msra.mxu0 0
    %1148 = vmatprep.subr.bf16.mxu0 0
    %1149 = vmatpush1.bf16.msra.mxu0 0
    %1150 = vmatprep.subr.bf16.mxu0 0
    %1151 = vmatpush1.bf16.msra.mxu0 0
    %1152 = vmatprep.subr.bf16.mxu0 0
    %1153 = vmatpush1.bf16.msra.mxu0 0
    %1154 = vmatprep.mubr.bf16.mxu0 0
    %1155 = vmatmul.mubr.bf16.gmra.mrb[0].mxu0 %v1120
    %v1156 = vpop.f32.mrb[0].mxu0
    %v1157 = vadd.f32 0.0, %v1156
    %v1158 = vpop.f32.mrb[0].mxu0
    %v1159 = vpop.f32.mrb[0].mxu0
    %v1160 = vadd.f32 0.0, %v1159
    %v1161 = vpop.f32.mrb[0].mxu0
    %1162 = vdwg.mxu0
    %v1164 = vsel %vm846, %v1026, 0
    %1166 = vmatprep.subr.bf16.mxu0 0
    %1167 = vmatpush1.bf16.msra.mxu0 %v448
    %1168 = vmatprep.subr.bf16.mxu0 0
    %1169 = vmatpush1.bf16.msra.mxu0 0
    %1170 = vmatprep.subr.bf16.mxu0 0
    %1171 = vmatpush1.bf16.msra.mxu0 0
    %1172 = vmatprep.subr.bf16.mxu0 0
    %1173 = vmatpush1.bf16.msra.mxu0 0
    %1174 = vmatprep.subr.bf16.mxu0 0
    %1175 = vmatpush1.bf16.msra.mxu0 0
    %1176 = vmatprep.subr.bf16.mxu0 0
    %1177 = vmatpush1.bf16.msra.mxu0 0
    %1178 = vmatprep.subr.bf16.mxu0 0
    %1179 = vmatpush1.bf16.msra.mxu0 0
    %1180 = vmatprep.subr.bf16.mxu0 0
    %1181 = vmatpush1.bf16.msra.mxu0 0
    %1182 = vmatprep.subr.bf16.mxu0 0
    %1183 = vmatpush1.bf16.msra.mxu0 0
    %1184 = vmatprep.subr.bf16.mxu0 0
    %1185 = vmatpush1.bf16.msra.mxu0 0
    %1186 = vmatprep.subr.bf16.mxu0 0
    %1187 = vmatpush1.bf16.msra.mxu0 0
    %1188 = vmatprep.subr.bf16.mxu0 0
    %1189 = vmatpush1.bf16.msra.mxu0 0
    %1190 = vmatprep.subr.bf16.mxu0 0
    %1191 = vmatpush1.bf16.msra.mxu0 0
    %1192 = vmatprep.subr.bf16.mxu0 0
    %1193 = vmatpush1.bf16.msra.mxu0 0
    %1194 = vmatprep.subr.bf16.mxu0 0
    %1195 = vmatpush1.bf16.msra.mxu0 0
    %1196 = vmatprep.subr.bf16.mxu0 0
    %1197 = vmatpush1.bf16.msra.mxu0 0
    %1198 = vmatprep.mubr.bf16.mxu0 0
    %1199 = vmatmul.mubr.bf16.gmra.mrb[0].mxu0 %v1164
    %v1200 = vpop.f32.mrb[0].mxu0
    %v1201 = vadd.f32 0.0, %v1200
    %v1202 = vpop.f32.mrb[0].mxu0
    %v1203 = vpop.f32.mrb[0].mxu0
    %v1204 = vadd.f32 0.0, %v1203
    %v1205 = vpop.f32.mrb[0].mxu0
    %1206 = vdwg.mxu0
    %v1208 = vsel %vm846, %v1027, 0
    %1210 = vmatprep.subr.bf16.mxu0 0
    %1211 = vmatpush1.bf16.msra.mxu0 %v432
    %1212 = vmatprep.subr.bf16.mxu0 0
    %1213 = vmatpush1.bf16.msra.mxu0 0
    %1214 = vmatprep.subr.bf16.mxu0 0
    %1215 = vmatpush1.bf16.msra.mxu0 0
    %1216 = vmatprep.subr.bf16.mxu0 0
    %1217 = vmatpush1.bf16.msra.mxu0 0
    %1218 = vmatprep.subr.bf16.mxu0 0
    %1219 = vmatpush1.bf16.msra.mxu0 0
    %1220 = vmatprep.subr.bf16.mxu0 0
    %1221 = vmatpush1.bf16.msra.mxu0 0
    %1222 = vmatprep.subr.bf16.mxu0 0
    %1223 = vmatpush1.bf16.msra.mxu0 0
    %1224 = vmatprep.subr.bf16.mxu0 0
    %1225 = vmatpush1.bf16.msra.mxu0 0
    %1226 = vmatprep.subr.bf16.mxu0 0
    %1227 = vmatpush1.bf16.msra.mxu0 0
    %1228 = vmatprep.subr.bf16.mxu0 0
    %1229 = vmatpush1.bf16.msra.mxu0 0
    %1230 = vmatprep.subr.bf16.mxu0 0
    %1231 = vmatpush1.bf16.msra.mxu0 0
    %1232 = vmatprep.subr.bf16.mxu0 0
    %1233 = vmatpush1.bf16.msra.mxu0 0
    %1234 = vmatprep.subr.bf16.mxu0 0
    %1235 = vmatpush1.bf16.msra.mxu0 0
    %1236 = vmatprep.subr.bf16.mxu0 0
    %1237 = vmatpush1.bf16.msra.mxu0 0
    %1238 = vmatprep.subr.bf16.mxu0 0
    %1239 = vmatpush1.bf16.msra.mxu0 0
    %1240 = vmatprep.subr.bf16.mxu0 0
    %1241 = vmatpush1.bf16.msra.mxu0 0
    %1242 = vmatprep.mubr.bf16.mxu0 0
    %1243 = vmatmul.mubr.bf16.gmra.mrb[0].mxu0 %v1208
    %v1244 = vpop.f32.mrb[0].mxu0
    %v1245 = vadd.f32 0.0, %v1244
    %v1246 = vpop.f32.mrb[0].mxu0
    %v1247 = vpop.f32.mrb[0].mxu0
    %v1248 = vadd.f32 0.0, %v1247
    %v1249 = vpop.f32.mrb[0].mxu0
    %1250 = vdwg.mxu0
    %v1252 = vsel %vm846, %v1028, 0
    %1254 = vmatprep.subr.bf16.mxu0 0
    %1255 = vmatpush1.bf16.msra.mxu0 %v438
    %1256 = vmatprep.subr.bf16.mxu0 0
    %1257 = vmatpush1.bf16.msra.mxu0 0
    %1258 = vmatprep.subr.bf16.mxu0 0
    %1259 = vmatpush1.bf16.msra.mxu0 0
    %1260 = vmatprep.subr.bf16.mxu0 0
    %1261 = vmatpush1.bf16.msra.mxu0 0
    %1262 = vmatprep.subr.bf16.mxu0 0
    %1263 = vmatpush1.bf16.msra.mxu0 0
    %1264 = vmatprep.subr.bf16.mxu0 0
    %1265 = vmatpush1.bf16.msra.mxu0 0
    %1266 = vmatprep.subr.bf16.mxu0 0
    %1267 = vmatpush1.bf16.msra.mxu0 0
    %1268 = vmatprep.subr.bf16.mxu0 0
    %1269 = vmatpush1.bf16.msra.mxu0 0
    %1270 = vmatprep.subr.bf16.mxu0 0
    %1271 = vmatpush1.bf16.msra.mxu0 0
    %1272 = vmatprep.subr.bf16.mxu0 0
    %1273 = vmatpush1.bf16.msra.mxu0 0
    %1274 = vmatprep.subr.bf16.mxu0 0
    %1275 = vmatpush1.bf16.msra.mxu0 0
    %1276 = vmatprep.subr.bf16.mxu0 0
    %1277 = vmatpush1.bf16.msra.mxu0 0
    %1278 = vmatprep.subr.bf16.mxu0 0
    %1279 = vmatpush1.bf16.msra.mxu0 0
    %1280 = vmatprep.subr.bf16.mxu0 0
    %1281 = vmatpush1.bf16.msra.mxu0 0
    %1282 = vmatprep.subr.bf16.mxu0 0
    %1283 = vmatpush1.bf16.msra.mxu0 0
    %1284 = vmatprep.subr.bf16.mxu0 0
    %1285 = vmatpush1.bf16.msra.mxu0 0
    %1286 = vmatprep.mubr.bf16.mxu0 0
    %1287 = vmatmul.mubr.bf16.gmra.mrb[0].mxu0 %v1252
    %v1288 = vpop.f32.mrb[0].mxu0
    %v1289 = vadd.f32 0.0, %v1288
    %v1290 = vpop.f32.mrb[0].mxu0
    %v1291 = vpop.f32.mrb[0].mxu0
    %v1292 = vadd.f32 0.0, %v1291
    %v1293 = vpop.f32.mrb[0].mxu0
    %1294 = vdwg.mxu0
    %v1296 = vsel %vm846, %v1029, 0
    %1298 = vmatprep.subr.bf16.mxu0 0
    %1299 = vmatpush1.bf16.msra.mxu0 %v444
    %1300 = vmatprep.subr.bf16.mxu0 0
    %1301 = vmatpush1.bf16.msra.mxu0 0
    %1302 = vmatprep.subr.bf16.mxu0 0
    %1303 = vmatpush1.bf16.msra.mxu0 0
    %1304 = vmatprep.subr.bf16.mxu0 0
    %1305 = vmatpush1.bf16.msra.mxu0 0
    %1306 = vmatprep.subr.bf16.mxu0 0
    %1307 = vmatpush1.bf16.msra.mxu0 0
    %1308 = vmatprep.subr.bf16.mxu0 0
    %1309 = vmatpush1.bf16.msra.mxu0 0
    %1310 = vmatprep.subr.bf16.mxu0 0
    %1311 = vmatpush1.bf16.msra.mxu0 0
    %1312 = vmatprep.subr.bf16.mxu0 0
    %1313 = vmatpush1.bf16.msra.mxu0 0
    %1314 = vmatprep.subr.bf16.mxu0 0
    %1315 = vmatpush1.bf16.msra.mxu0 0
    %1316 = vmatprep.subr.bf16.mxu0 0
    %1317 = vmatpush1.bf16.msra.mxu0 0
    %1318 = vmatprep.subr.bf16.mxu0 0
    %1319 = vmatpush1.bf16.msra.mxu0 0
    %1320 = vmatprep.subr.bf16.mxu0 0
    %1321 = vmatpush1.bf16.msra.mxu0 0
    %1322 = vmatprep.subr.bf16.mxu0 0
    %1323 = vmatpush1.bf16.msra.mxu0 0
    %1324 = vmatprep.subr.bf16.mxu0 0
    %1325 = vmatpush1.bf16.msra.mxu0 0
    %1326 = vmatprep.subr.bf16.mxu0 0
    %1327 = vmatpush1.bf16.msra.mxu0 0
    %1328 = vmatprep.subr.bf16.mxu0 0
    %1329 = vmatpush1.bf16.msra.mxu0 0
    %1330 = vmatprep.mubr.bf16.mxu0 0
    %1331 = vmatmul.mubr.bf16.gmra.mrb[0].mxu0 %v1296
    %v1332 = vpop.f32.mrb[0].mxu0
    %v1333 = vadd.f32 0.0, %v1332
    %v1334 = vpop.f32.mrb[0].mxu0
    %v1335 = vpop.f32.mrb[0].mxu0
    %v1336 = vadd.f32 0.0, %v1335
    %v1337 = vpop.f32.mrb[0].mxu0
    %1338 = vdwg.mxu0
    %v1340 = vsel %vm846, %v1030, 0
    %1342 = vmatprep.subr.bf16.mxu0 0
    %1343 = vmatpush1.bf16.msra.mxu0 %v450
    %1344 = vmatprep.subr.bf16.mxu0 0
    %1345 = vmatpush1.bf16.msra.mxu0 0
    %1346 = vmatprep.subr.bf16.mxu0 0
    %1347 = vmatpush1.bf16.msra.mxu0 0
    %1348 = vmatprep.subr.bf16.mxu0 0
    %1349 = vmatpush1.bf16.msra.mxu0 0
    %1350 = vmatprep.subr.bf16.mxu0 0
    %1351 = vmatpush1.bf16.msra.mxu0 0
    %1352 = vmatprep.subr.bf16.mxu0 0
    %1353 = vmatpush1.bf16.msra.mxu0 0
    %1354 = vmatprep.subr.bf16.mxu0 0
    %1355 = vmatpush1.bf16.msra.mxu0 0
    %1356 = vmatprep.subr.bf16.mxu0 0
    %1357 = vmatpush1.bf16.msra.mxu0 0
    %1358 = vmatprep.subr.bf16.mxu0 0
    %1359 = vmatpush1.bf16.msra.mxu0 0
    %1360 = vmatprep.subr.bf16.mxu0 0
    %1361 = vmatpush1.bf16.msra.mxu0 0
    %1362 = vmatprep.subr.bf16.mxu0 0
    %1363 = vmatpush1.bf16.msra.mxu0 0
    %1364 = vmatprep.subr.bf16.mxu0 0
    %1365 = vmatpush1.bf16.msra.mxu0 0
    %1366 = vmatprep.subr.bf16.mxu0 0
    %1367 = vmatpush1.bf16.msra.mxu0 0
    %1368 = vmatprep.subr.bf16.mxu0 0
    %1369 = vmatpush1.bf16.msra.mxu0 0
    %1370 = vmatprep.subr.bf16.mxu0 0
    %1371 = vmatpush1.bf16.msra.mxu0 0
    %1372 = vmatprep.subr.bf16.mxu0 0
    %1373 = vmatpush1.bf16.msra.mxu0 0
    %1374 = vmatprep.mubr.bf16.mxu0 0
    %1375 = vmatmul.mubr.bf16.gmra.mrb[0].mxu0 %v1340
    %v1376 = vpop.f32.mrb[0].mxu0
    %v1377 = vadd.f32 0.0, %v1376
    %v1378 = vpop.f32.mrb[0].mxu0
    %v1379 = vpop.f32.mrb[0].mxu0
    %v1380 = vadd.f32 0.0, %v1379
    %v1381 = vpop.f32.mrb[0].mxu0
    %1382 = vdwg.mxu0
    %1387 = vrot.lane.b32.xlu0 %v1113, 32
    %v1388 = vpop.permute.xlu0 %1387
    %1389 = vrot.lane.b32.xlu0 %v1116, 32
    %v1390 = vpop.permute.xlu0 %1389
    %1391 = vrot.lane.b32.xlu0 %v1289, 32
    %v1392 = vpop.permute.xlu0 %1391
    %1393 = vrot.lane.b32.xlu0 %v1292, 32
    %v1394 = vpop.permute.xlu0 %1393
    %1403 = vrot.lane.b32.xlu0 %v1157, 64
    %v1404 = vpop.permute.xlu0 %1403
    %1405 = vrot.lane.b32.xlu0 %v1160, 64
    %v1406 = vpop.permute.xlu0 %1405
    %1407 = vrot.lane.b32.xlu0 %v1333, 64
    %v1408 = vpop.permute.xlu0 %1407
    %1409 = vrot.lane.b32.xlu0 %v1336, 64
    %v1410 = vpop.permute.xlu0 %1409
    %1419 = vrot.lane.b32.xlu0 %v1201, 96
    %v1420 = vpop.permute.xlu0 %1419
    %1421 = vrot.lane.b32.xlu0 %v1204, 96
    %v1422 = vpop.permute.xlu0 %1421
    %1423 = vrot.lane.b32.xlu0 %v1377, 96
    %v1424 = vpop.permute.xlu0 %1423
    %1425 = vrot.lane.b32.xlu0 %v1380, 96
    %v1426 = vpop.permute.xlu0 %1425
    %v1431 = vsel %vm453, %v1069, %v1388
    %v1432 = vsel %vm453, %v1072, %v1390
    %v1433 = vsel %vm453, %v1245, %v1392
    %v1434 = vsel %vm453, %v1248, %v1394
    %vm1435 = vcmask 523264
    %v1436 = vsel %vm1435, %v1431, %v1404
    %v1437 = vsel %vm1435, %v1432, %v1406
    %v1438 = vsel %vm1435, %v1433, %v1408
    %v1439 = vsel %vm1435, %v1434, %v1410
    %vm1440 = vcmask 785408
    %v1441 = vsel %vm1440, %v1436, %v1420
    %v1442 = vsel %vm1440, %v1437, %v1422
    %v1443 = vsel %vm1440, %v1438, %v1424
    %v1444 = vsel %vm1440, %v1439, %v1426
    %v1445 = vpack.c.bf16 %v1442, %v1441
    %v1446 = vpack.c.bf16 %v1444, %v1443
    %v1447 = vld [vmem:[#allocation7] sm:$0xf]
    %v1448 = vld [vmem:[#allocation7 + $0x4] sm:$0xf]
    %v1449 = vld [vmem:[#allocation7 + $0x8] sm:$0xf]
    %v1450 = vld [vmem:[#allocation7 + $0xc] sm:$0xf]
    %v1451 = vld [vmem:[#allocation7 + $0x10] sm:$0xf]
    %v1452 = vld [vmem:[#allocation7 + $0x14] sm:$0xf]
    %v1453 = vld [vmem:[#allocation7 + $0x18] sm:$0xf]
    %v1454 = vld [vmem:[#allocation7 + $0x1c] sm:$0xf]
    %v1455 = vld [vmem:[#allocation7 + $0x20] sm:$0xf]
    %v1456 = vld [vmem:[#allocation7 + $0x24] sm:$0xf]
    %v1457 = vld [vmem:[#allocation7 + $0x28] sm:$0xf]
    %v1458 = vld [vmem:[#allocation7 + $0x2c] sm:$0xf]
    %v1459 = vld [vmem:[#allocation7 + $0x30] sm:$0xf]
    %v1460 = vld [vmem:[#allocation7 + $0x34] sm:$0xf]
    %v1461 = vld [vmem:[#allocation7 + $0x38] sm:$0xf]
    %v1462 = vld [vmem:[#allocation7 + $0x3c] sm:$0xf]
    %v1463 = vld [vmem:[%s4] sm:$0x1]
    %v1465 = vlaneseq
    %v1466 = vshrl.u32 %v1465, 7
    %v1467 = vsub.s32 0, %v1466
    %v1468 = vrot.slane %v1463, %v1467
    %v1486 = vunpack.c.l.b16 %v1447
    %v1487 = vunpack.c.l.b16 %v1448
    %v1488 = vunpack.c.l.b16 %v1449
    %v1489 = vunpack.c.l.b16 %v1450
    %v1490 = vunpack.c.l.b16 %v1451
    %v1491 = vunpack.c.l.b16 %v1452
    %v1492 = vunpack.c.l.b16 %v1453
    %v1493 = vunpack.c.l.b16 %v1454
    %v1494 = vunpack.c.l.b16 %v1455
    %v1495 = vunpack.c.l.b16 %v1456
    %v1496 = vunpack.c.l.b16 %v1457
    %v1497 = vunpack.c.l.b16 %v1458
    %v1498 = vunpack.c.l.b16 %v1459
    %v1499 = vunpack.c.l.b16 %v1460
    %v1500 = vunpack.c.l.b16 %v1461
    %v1501 = vunpack.c.l.b16 %v1462
    %v1502 = vpack.c.b16 %v1487, %v1486
    %v1503 = vpack.c.b16 %v1489, %v1488
    %v1504 = vpack.c.b16 %v1491, %v1490
    %v1505 = vpack.c.b16 %v1493, %v1492
    %v1506 = vpack.c.b16 %v1495, %v1494
    %v1507 = vpack.c.b16 %v1497, %v1496
    %v1508 = vpack.c.b16 %v1499, %v1498
    %v1509 = vpack.c.b16 %v1501, %v1500
    %1518 = vmatprep.subr.bf16.mxu0 0
    %1519 = vmatpush1.bf16.msra.mxu0 %v1502
    %1520 = vmatprep.subr.bf16.mxu0 0
    %1521 = vmatpush1.bf16.msra.mxu0 %v1503
    %1522 = vmatprep.subr.bf16.mxu0 0
    %1523 = vmatpush1.bf16.msra.mxu0 %v1504
    %1524 = vmatprep.subr.bf16.mxu0 0
    %1525 = vmatpush1.bf16.msra.mxu0 %v1505
    %1526 = vmatprep.subr.bf16.mxu0 0
    %1527 = vmatpush1.bf16.msra.mxu0 %v1506
    %1528 = vmatprep.subr.bf16.mxu0 0
    %1529 = vmatpush1.bf16.msra.mxu0 %v1507
    %1530 = vmatprep.subr.bf16.mxu0 0
    %1531 = vmatpush1.bf16.msra.mxu0 %v1508
    %1532 = vmatprep.subr.bf16.mxu0 0
    %1533 = vmatpush1.bf16.msra.mxu0 %v1509
    %1534 = vmatprep.subr.bf16.mxu0 0
    %1535 = vmatpush1.bf16.msra.mxu0 0
    %1536 = vmatprep.subr.bf16.mxu0 0
    %1537 = vmatpush1.bf16.msra.mxu0 0
    %1538 = vmatprep.subr.bf16.mxu0 0
    %1539 = vmatpush1.bf16.msra.mxu0 0
    %1540 = vmatprep.subr.bf16.mxu0 0
    %1541 = vmatpush1.bf16.msra.mxu0 0
    %1542 = vmatprep.subr.bf16.mxu0 0
    %1543 = vmatpush1.bf16.msra.mxu0 0
    %1544 = vmatprep.subr.bf16.mxu0 0
    %1545 = vmatpush1.bf16.msra.mxu0 0
    %1546 = vmatprep.subr.bf16.mxu0 0
    %1547 = vmatpush1.bf16.msra.mxu0 0
    %1548 = vmatprep.subr.bf16.mxu0 0
    %1549 = vmatpush1.bf16.msra.mxu0 0
    %1550 = vmatprep.mubr.bf16.mxu0 0
    %1551 = vmatmul.mubr.bf16.gmra.mrb[0].mxu0 %v1445
    %v1552 = vpop.f32.mrb[0].mxu0
    %v1553 = vadd.f32 %v1468, %v1552
    %v1554 = vpop.f32.mrb[0].mxu0
    %v1555 = vpop.f32.mrb[0].mxu0
    %v1556 = vadd.f32 %v1468, %v1555
    %v1557 = vpop.f32.mrb[0].mxu0
    %1558 = vmatprep.mubr.bf16.mxu0 0
    %1559 = vmatmul.mubr.bf16.gmra.mrb[0].mxu0 %v1446
    %v1560 = vpop.f32.mrb[0].mxu0
    %v1561 = vadd.f32 %v1468, %v1560
    %v1562 = vpop.f32.mrb[0].mxu0
    %v1563 = vpop.f32.mrb[0].mxu0
    %v1564 = vadd.f32 %v1468, %v1563
    %v1565 = vpop.f32.mrb[0].mxu0
    %1566 = vdwg.mxu0
    %v1567 = vadd.f32 %v114, %v1553
    %v1568 = vadd.f32 %v115, %v1556
    %v1569 = vadd.f32 %v116, %v1561
    %v1570 = vadd.f32 %v117, %v1564
    %v1571 = vld [vmem:[%s5] sm:$0x1]
    %v1572 = vld [vmem:[%s6] sm:$0x1]
    %1573 = vadd.xlane.f32.xlu0 %v1567
    %v1574 = vpop.xlane.xlu0 %1573
    %1575 = vadd.xlane.f32.xlu0 %v1568
    %v1576 = vpop.xlane.xlu0 %1575
    %1577 = vadd.xlane.f32.xlu0 %v1569
    %v1578 = vpop.xlane.xlu0 %1577
    %1579 = vadd.xlane.f32.xlu0 %v1570
    %v1580 = vpop.xlane.xlu0 %1579
    %v1581 = vrcp.pop 128.0
    %v1582 = vmul.f32 %v1574, %v1581
    %v1583 = vmul.f32 %v1576, %v1581
    %v1584 = vmul.f32 %v1578, %v1581
    %v1585 = vmul.f32 %v1580, %v1581
    %v1586 = vsub.f32 %v1567, %v1582
    %v1587 = vsub.f32 %v1568, %v1583
    %v1588 = vsub.f32 %v1569, %v1584
    %v1589 = vsub.f32 %v1570, %v1585
    %v1590 = vmul.f32 %v1586, %v1586
    %v1591 = vmul.f32 %v1587, %v1587
    %v1592 = vmul.f32 %v1588, %v1588
    %v1593 = vmul.f32 %v1589, %v1589
    %1594 = vadd.xlane.f32.xlu0 %v1590
    %v1595 = vpop.xlane.xlu0 %1594
    %1596 = vadd.xlane.f32.xlu0 %v1591
    %v1597 = vpop.xlane.xlu0 %1596
    %1598 = vadd.xlane.f32.xlu0 %v1592
    %v1599 = vpop.xlane.xlu0 %1598
    %1600 = vadd.xlane.f32.xlu0 %v1593
    %v1601 = vpop.xlane.xlu0 %1600
    %v1602 = vmul.f32 %v1595, %v1581
    %v1603 = vmul.f32 %v1597, %v1581
    %v1604 = vmul.f32 %v1599, %v1581
    %v1605 = vmul.f32 %v1601, %v1581
    %v1606 = vadd.f32 %v1602, 1e-12
    %v1607 = vadd.f32 %v1603, 1e-12
    %v1608 = vadd.f32 %v1604, 1e-12
    %v1609 = vadd.f32 %v1605, 1e-12
    %v1610 = vrsqrt.pop %v1606
    %v1611 = vrsqrt.pop %v1607
    %v1612 = vrsqrt.pop %v1608
    %v1613 = vrsqrt.pop %v1609
    %v1614 = vmul.f32 %v1586, %v1610
    %v1615 = vmul.f32 %v1587, %v1611
    %v1616 = vmul.f32 %v1588, %v1612
    %v1617 = vmul.f32 %v1589, %v1613
    %v1619 = vlaneseq
    %v1620 = vshrl.u32 %v1619, 7
    %v1621 = vsub.s32 0, %v1620
    %v1622 = vrot.slane %v1571, %v1621
    %v1624 = vmul.f32 %v1614, %v1622
    %v1625 = vmul.f32 %v1615, %v1622
    %v1626 = vmul.f32 %v1616, %v1622
    %v1627 = vmul.f32 %v1617, %v1622
    %v1629 = vlaneseq
    %v1630 = vshrl.u32 %v1629, 7
    %v1631 = vsub.s32 0, %v1630
    %v1632 = vrot.slane %v1572, %v1631
    %v1634 = vadd.f32 %v1624, %v1632
    %v1635 = vadd.f32 %v1625, %v1632
    %v1636 = vadd.f32 %v1626, %v1632
    %v1637 = vadd.f32 %v1627, %v1632
    %v1638 = vpack.c.bf16 %v1635, %v1634
    %v1639 = vpack.c.bf16 %v1637, %v1636
    %v1640 = vld [vmem:[#allocation8] sm:$0xff]
    %v1641 = vld [vmem:[#allocation8 + $0x8] sm:$0xff]
    %v1642 = vld [vmem:[#allocation8 + $0x10] sm:$0xff]
    %v1643 = vld [vmem:[#allocation8 + $0x18] sm:$0xff]
    %v1644 = vld [vmem:[#allocation8 + $0x20] sm:$0xff]
    %v1645 = vld [vmem:[#allocation8 + $0x28] sm:$0xff]
    %v1646 = vld [vmem:[#allocation8 + $0x30] sm:$0xff]
    %v1647 = vld [vmem:[#allocation8 + $0x38] sm:$0xff]
    %v1648 = vld [vmem:[#allocation8 + $0x40] sm:$0xff]
    %v1649 = vld [vmem:[#allocation8 + $0x48] sm:$0xff]
    %v1650 = vld [vmem:[#allocation8 + $0x50] sm:$0xff]
    %v1651 = vld [vmem:[#allocation8 + $0x58] sm:$0xff]
    %v1652 = vld [vmem:[#allocation8 + $0x60] sm:$0xff]
    %v1653 = vld [vmem:[#allocation8 + $0x68] sm:$0xff]
    %v1654 = vld [vmem:[#allocation8 + $0x70] sm:$0xff]
    %v1655 = vld [vmem:[#allocation8 + $0x78] sm:$0xff]
    %v1656 = vld [vmem:[#allocation8 + $0x80] sm:$0xff]
    %v1657 = vld [vmem:[#allocation8 + $0x88] sm:$0xff]
    %v1658 = vld [vmem:[#allocation8 + $0x90] sm:$0xff]
    %v1659 = vld [vmem:[#allocation8 + $0x98] sm:$0xff]
    %v1660 = vld [vmem:[#allocation8 + $0xa0] sm:$0xff]
    %v1661 = vld [vmem:[#allocation8 + $0xa8] sm:$0xff]
    %v1662 = vld [vmem:[#allocation8 + $0xb0] sm:$0xff]
    %v1663 = vld [vmem:[#allocation8 + $0xb8] sm:$0xff]
    %v1664 = vld [vmem:[#allocation8 + $0xc0] sm:$0xff]
    %v1665 = vld [vmem:[#allocation8 + $0xc8] sm:$0xff]
    %v1666 = vld [vmem:[#allocation8 + $0xd0] sm:$0xff]
    %v1667 = vld [vmem:[#allocation8 + $0xd8] sm:$0xff]
    %v1668 = vld [vmem:[#allocation8 + $0xe0] sm:$0xff]
    %v1669 = vld [vmem:[#allocation8 + $0xe8] sm:$0xff]
    %v1670 = vld [vmem:[#allocation8 + $0xf0] sm:$0xff]
    %v1671 = vld [vmem:[#allocation8 + $0xf8] sm:$0xff]
    %v1672 = vld [vmem:[%s8] sm:$0xf]
    %v1674 = vlaneseq
    %v1675 = vshrl.u32 %v1674, 7
    %v1676 = vsub.s32 0, %v1675
    %v1677 = vrot.slane %v1672, %v1676
    %v1678 = vlaneseq
    %v1679 = vshrl.u32 %v1678, 7
    %v1680 = vsub.s32 1, %v1679
    %v1681 = vrot.slane %v1672, %v1680
    %v1682 = vlaneseq
    %v1683 = vshrl.u32 %v1682, 7
    %v1684 = vsub.s32 2, %v1683
    %v1685 = vrot.slane %v1672, %v1684
    %v1686 = vlaneseq
    %v1687 = vshrl.u32 %v1686, 7
    %v1688 = vsub.s32 3, %v1687
    %v1689 = vrot.slane %v1672, %v1688
    %v1726 = vunpack.c.l.b16 %v1640
    %v1727 = vunpack.c.h.b16 %v1640
    %v1728 = vunpack.c.l.b16 %v1641
    %v1729 = vunpack.c.h.b16 %v1641
    %v1730 = vunpack.c.l.b16 %v1642
    %v1731 = vunpack.c.h.b16 %v1642
    %v1732 = vunpack.c.l.b16 %v1643
    %v1733 = vunpack.c.h.b16 %v1643
    %v1734 = vunpack.c.l.b16 %v1644
    %v1735 = vunpack.c.h.b16 %v1644
    %v1736 = vunpack.c.l.b16 %v1645
    %v1737 = vunpack.c.h.b16 %v1645
    %v1738 = vunpack.c.l.b16 %v1646
    %v1739 = vunpack.c.h.b16 %v1646
    %v1740 = vunpack.c.l.b16 %v1647
    %v1741 = vunpack.c.h.b16 %v1647
    %v1742 = vunpack.c.l.b16 %v1648
    %v1743 = vunpack.c.h.b16 %v1648
    %v1744 = vunpack.c.l.b16 %v1649
    %v1745 = vunpack.c.h.b16 %v1649
    %v1746 = vunpack.c.l.b16 %v1650
    %v1747 = vunpack.c.h.b16 %v1650
    %v1748 = vunpack.c.l.b16 %v1651
    %v1749 = vunpack.c.h.b16 %v1651
    %v1750 = vunpack.c.l.b16 %v1652
    %v1751 = vunpack.c.h.b16 %v1652
    %v1752 = vunpack.c.l.b16 %v1653
    %v1753 = vunpack.c.h.b16 %v1653
    %v1754 = vunpack.c.l.b16 %v1654
    %v1755 = vunpack.c.h.b16 %v1654
    %v1756 = vunpack.c.l.b16 %v1655
    %v1757 = vunpack.c.h.b16 %v1655
    %v1758 = vunpack.c.l.b16 %v1656
    %v1759 = vunpack.c.h.b16 %v1656
    %v1760 = vunpack.c.l.b16 %v1657
    %v1761 = vunpack.c.h.b16 %v1657
    %v1762 = vunpack.c.l.b16 %v1658
    %v1763 = vunpack.c.h.b16 %v1658
    %v1764 = vunpack.c.l.b16 %v1659
    %v1765 = vunpack.c.h.b16 %v1659
    %v1766 = vunpack.c.l.b16 %v1660
    %v1767 = vunpack.c.h.b16 %v1660
    %v1768 = vunpack.c.l.b16 %v1661
    %v1769 = vunpack.c.h.b16 %v1661
    %v1770 = vunpack.c.l.b16 %v1662
    %v1771 = vunpack.c.h.b16 %v1662
    %v1772 = vunpack.c.l.b16 %v1663
    %v1773 = vunpack.c.h.b16 %v1663
    %v1774 = vunpack.c.l.b16 %v1664
    %v1775 = vunpack.c.h.b16 %v1664
    %v1776 = vunpack.c.l.b16 %v1665
    %v1777 = vunpack.c.h.b16 %v1665
    %v1778 = vunpack.c.l.b16 %v1666
    %v1779 = vunpack.c.h.b16 %v1666
    %v1780 = vunpack.c.l.b16 %v1667
    %v1781 = vunpack.c.h.b16 %v1667
    %v1782 = vunpack.c.l.b16 %v1668
    %v1783 = vunpack.c.h.b16 %v1668
    %v1784 = vunpack.c.l.b16 %v1669
    %v1785 = vunpack.c.h.b16 %v1669
    %v1786 = vunpack.c.l.b16 %v1670
    %v1787 = vunpack.c.h.b16 %v1670
    %v1788 = vunpack.c.l.b16 %v1671
    %v1789 = vunpack.c.h.b16 %v1671
    %v1790 = vpack.c.b16 %v1730, %v1726
    %v1791 = vpack.c.b16 %v1731, %v1727
    %v1792 = vpack.c.b16 %v1732, %v1728
    %v1793 = vpack.c.b16 %v1733, %v1729
    %v1794 = vpack.c.b16 %v1738, %v1734
    %v1795 = vpack.c.b16 %v1739, %v1735
    %v1796 = vpack.c.b16 %v1740, %v1736
    %v1797 = vpack.c.b16 %v1741, %v1737
    %v1798 = vpack.c.b16 %v1746, %v1742
    %v1799 = vpack.c.b16 %v1747, %v1743
    %v1800 = vpack.c.b16 %v1748, %v1744
    %v1801 = vpack.c.b16 %v1749, %v1745
    %v1802 = vpack.c.b16 %v1754, %v1750
    %v1803 = vpack.c.b16 %v1755, %v1751
    %v1804 = vpack.c.b16 %v1756, %v1752
    %v1805 = vpack.c.b16 %v1757, %v1753
    %v1806 = vpack.c.b16 %v1762, %v1758
    %v1807 = vpack.c.b16 %v1763, %v1759
    %v1808 = vpack.c.b16 %v1764, %v1760
    %v1809 = vpack.c.b16 %v1765, %v1761
    %v1810 = vpack.c.b16 %v1770, %v1766
    %v1811 = vpack.c.b16 %v1771, %v1767
    %v1812 = vpack.c.b16 %v1772, %v1768
    %v1813 = vpack.c.b16 %v1773, %v1769
    %v1814 = vpack.c.b16 %v1778, %v1774
    %v1815 = vpack.c.b16 %v1779, %v1775
    %v1816 = vpack.c.b16 %v1780, %v1776
    %v1817 = vpack.c.b16 %v1781, %v1777
    %v1818 = vpack.c.b16 %v1786, %v1782
    %v1819 = vpack.c.b16 %v1787, %v1783
    %v1820 = vpack.c.b16 %v1788, %v1784
    %v1821 = vpack.c.b16 %v1789, %v1785
    %1854 = vmatprep.subr.bf16.mxu0 %v1791
    %1855 = vmatpush1.bf16.msra.mxu0 %v1790
    %1856 = vmatprep.subr.bf16.mxu0 %v1795
    %1857 = vmatpush1.bf16.msra.mxu0 %v1794
    %1858 = vmatprep.subr.bf16.mxu0 %v1799
    %1859 = vmatpush1.bf16.msra.mxu0 %v1798
    %1860 = vmatprep.subr.bf16.mxu0 %v1803
    %1861 = vmatpush1.bf16.msra.mxu0 %v1802
    %1862 = vmatprep.subr.bf16.mxu0 %v1807
    %1863 = vmatpush1.bf16.msra.mxu0 %v1806
    %1864 = vmatprep.subr.bf16.mxu0 %v1811
    %1865 = vmatpush1.bf16.msra.mxu0 %v1810
    %1866 = vmatprep.subr.bf16.mxu0 %v1815
    %1867 = vmatpush1.bf16.msra.mxu0 %v1814
    %1868 = vmatprep.subr.bf16.mxu0 %v1819
    %1869 = vmatpush1.bf16.msra.mxu0 %v1818
    %1870 = vmatprep.subr.bf16.mxu0 0
    %1871 = vmatpush1.bf16.msra.mxu0 0
    %1872 = vmatprep.subr.bf16.mxu0 0
    %1873 = vmatpush1.bf16.msra.mxu0 0
    %1874 = vmatprep.subr.bf16.mxu0 0
    %1875 = vmatpush1.bf16.msra.mxu0 0
    %1876 = vmatprep.subr.bf16.mxu0 0
    %1877 = vmatpush1.bf16.msra.mxu0 0
    %1878 = vmatprep.subr.bf16.mxu0 0
    %1879 = vmatpush1.bf16.msra.mxu0 0
    %1880 = vmatprep.subr.bf16.mxu0 0
    %1881 = vmatpush1.bf16.msra.mxu0 0
    %1882 = vmatprep.subr.bf16.mxu0 0
    %1883 = vmatpush1.bf16.msra.mxu0 0
    %1884 = vmatprep.subr.bf16.mxu0 0
    %1885 = vmatpush1.bf16.msra.mxu0 0
    %1886 = vmatprep.mubr.bf16.mxu0 0
    %1887 = vmatmul.mubr.bf16.gmra.mrb[0].mxu0 %v1638
    %v1888 = vpop.f32.mrb[0].mxu0
    %v1889 = vadd.f32 %v1677, %v1888
    %v1890 = vpop.f32.mrb[0].mxu0
    %v1891 = vadd.f32 %v1681, %v1890
    %v1892 = vpop.f32.mrb[0].mxu0
    %v1893 = vadd.f32 %v1677, %v1892
    %v1894 = vpop.f32.mrb[0].mxu0
    %v1895 = vadd.f32 %v1681, %v1894
    %1896 = vmatprep.mubr.bf16.mxu0 0
    %1897 = vmatmul.mubr.bf16.gmra.mrb[0].mxu0 %v1639
    %v1898 = vpop.f32.mrb[0].mxu0
    %v1899 = vadd.f32 %v1677, %v1898
    %v1900 = vpop.f32.mrb[0].mxu0
    %v1901 = vadd.f32 %v1681, %v1900
    %v1902 = vpop.f32.mrb[0].mxu0
    %v1903 = vadd.f32 %v1677, %v1902
    %v1904 = vpop.f32.mrb[0].mxu0
    %v1905 = vadd.f32 %v1681, %v1904
    %1906 = vdwg.mxu0
    %1907 = vmatprep.subr.bf16.mxu0 %v1793
    %1908 = vmatpush1.bf16.msra.mxu0 %v1792
    %1909 = vmatprep.subr.bf16.mxu0 %v1797
    %1910 = vmatpush1.bf16.msra.mxu0 %v1796
    %1911 = vmatprep.subr.bf16.mxu0 %v1801
    %1912 = vmatpush1.bf16.msra.mxu0 %v1800
    %1913 = vmatprep.subr.bf16.mxu0 %v1805
    %1914 = vmatpush1.bf16.msra.mxu0 %v1804
    %1915 = vmatprep.subr.bf16.mxu0 %v1809
    %1916 = vmatpush1.bf16.msra.mxu0 %v1808
    %1917 = vmatprep.subr.bf16.mxu0 %v1813
    %1918 = vmatpush1.bf16.msra.mxu0 %v1812
    %1919 = vmatprep.subr.bf16.mxu0 %v1817
    %1920 = vmatpush1.bf16.msra.mxu0 %v1816
    %1921 = vmatprep.subr.bf16.mxu0 %v1821
    %1922 = vmatpush1.bf16.msra.mxu0 %v1820
    %1923 = vmatprep.subr.bf16.mxu0 0
    %1924 = vmatpush1.bf16.msra.mxu0 0
    %1925 = vmatprep.subr.bf16.mxu0 0
    %1926 = vmatpush1.bf16.msra.mxu0 0
    %1927 = vmatprep.subr.bf16.mxu0 0
    %1928 = vmatpush1.bf16.msra.mxu0 0
    %1929 = vmatprep.subr.bf16.mxu0 0
    %1930 = vmatpush1.bf16.msra.mxu0 0
    %1931 = vmatprep.subr.bf16.mxu0 0
    %1932 = vmatpush1.bf16.msra.mxu0 0
    %1933 = vmatprep.subr.bf16.mxu0 0
    %1934 = vmatpush1.bf16.msra.mxu0 0
    %1935 = vmatprep.subr.bf16.mxu0 0
    %1936 = vmatpush1.bf16.msra.mxu0 0
    %1937 = vmatprep.subr.bf16.mxu0 0
    %1938 = vmatpush1.bf16.msra.mxu0 0
    %1939 = vmatprep.mubr.bf16.mxu0 0
    %1940 = vmatmul.mubr.bf16.gmra.mrb[0].mxu0 %v1638
    %v1941 = vpop.f32.mrb[0].mxu0
    %v1942 = vadd.f32 %v1685, %v1941
    %v1943 = vpop.f32.mrb[0].mxu0
    %v1944 = vadd.f32 %v1689, %v1943
    %v1945 = vpop.f32.mrb[0].mxu0
    %v1946 = vadd.f32 %v1685, %v1945
    %v1947 = vpop.f32.mrb[0].mxu0
    %v1948 = vadd.f32 %v1689, %v1947
    %1949 = vmatprep.mubr.bf16.mxu0 0
    %1950 = vmatmul.mubr.bf16.gmra.mrb[0].mxu0 %v1639
    %v1951 = vpop.f32.mrb[0].mxu0
    %v1952 = vadd.f32 %v1685, %v1951
    %v1953 = vpop.f32.mrb[0].mxu0
    %v1954 = vadd.f32 %v1689, %v1953
    %v1955 = vpop.f32.mrb[0].mxu0
    %v1956 = vadd.f32 %v1685, %v1955
    %v1957 = vpop.f32.mrb[0].mxu0
    %v1958 = vadd.f32 %v1689, %v1957
    %1959 = vdwg.mxu0
    %v1960 = vmul.f32 %v1889, 0.5
    %v1961 = vmul.f32 %v1891, 0.5
    %v1962 = vmul.f32 %v1942, 0.5
    %v1963 = vmul.f32 %v1944, 0.5
    %v1964 = vmul.f32 %v1893, 0.5
    %v1965 = vmul.f32 %v1895, 0.5
    %v1966 = vmul.f32 %v1946, 0.5
    %v1967 = vmul.f32 %v1948, 0.5
    %v1968 = vmul.f32 %v1899, 0.5
    %v1969 = vmul.f32 %v1901, 0.5
    %v1970 = vmul.f32 %v1952, 0.5
    %v1971 = vmul.f32 %v1954, 0.5
    %v1972 = vmul.f32 %v1903, 0.5
    %v1973 = vmul.f32 %v1905, 0.5
    %v1974 = vmul.f32 %v1956, 0.5
    %v1975 = vmul.f32 %v1958, 0.5
    %v1976 = vmul.f32 %v1889, 0.044715
    %v1977 = vmul.f32 %v1891, 0.044715
    %v1978 = vmul.f32 %v1942, 0.044715
    %v1979 = vmul.f32 %v1944, 0.044715
    %v1980 = vmul.f32 %v1893, 0.044715
    %v1981 = vmul.f32 %v1895, 0.044715
    %v1982 = vmul.f32 %v1946, 0.044715
    %v1983 = vmul.f32 %v1948, 0.044715
    %v1984 = vmul.f32 %v1899, 0.044715
    %v1985 = vmul.f32 %v1901, 0.044715
    %v1986 = vmul.f32 %v1952, 0.044715
    %v1987 = vmul.f32 %v1954, 0.044715
    %v1988 = vmul.f32 %v1903, 0.044715
    %v1989 = vmul.f32 %v1905, 0.044715
    %v1990 = vmul.f32 %v1956, 0.044715
    %v1991 = vmul.f32 %v1958, 0.044715
    %v1992 = vmul.f32 %v1976, %v1889
    %v1993 = vmul.f32 %v1977, %v1891
    %v1994 = vmul.f32 %v1978, %v1942
    %v1995 = vmul.f32 %v1979, %v1944
    %v1996 = vmul.f32 %v1980, %v1893
    %v1997 = vmul.f32 %v1981, %v1895
    %v1998 = vmul.f32 %v1982, %v1946
    %v1999 = vmul.f32 %v1983, %v1948
    %v2000 = vmul.f32 %v1984, %v1899
    %v2001 = vmul.f32 %v1985, %v1901
    %v2002 = vmul.f32 %v1986, %v1952
    %v2003 = vmul.f32 %v1987, %v1954
    %v2004 = vmul.f32 %v1988, %v1903
    %v2005 = vmul.f32 %v1989, %v1905
    %v2006 = vmul.f32 %v1990, %v1956
    %v2007 = vmul.f32 %v1991, %v1958
    %v2008 = vmul.f32 %v1992, %v1889
    %v2009 = vmul.f32 %v1993, %v1891
    %v2010 = vmul.f32 %v1994, %v1942
    %v2011 = vmul.f32 %v1995, %v1944
    %v2012 = vmul.f32 %v1996, %v1893
    %v2013 = vmul.f32 %v1997, %v1895
    %v2014 = vmul.f32 %v1998, %v1946
    %v2015 = vmul.f32 %v1999, %v1948
    %v2016 = vmul.f32 %v2000, %v1899
    %v2017 = vmul.f32 %v2001, %v1901
    %v2018 = vmul.f32 %v2002, %v1952
    %v2019 = vmul.f32 %v2003, %v1954
    %v2020 = vmul.f32 %v2004, %v1903
    %v2021 = vmul.f32 %v2005, %v1905
    %v2022 = vmul.f32 %v2006, %v1956
    %v2023 = vmul.f32 %v2007, %v1958
    %v2024 = vadd.f32 %v1889, %v2008
    %v2025 = vadd.f32 %v1891, %v2009
    %v2026 = vadd.f32 %v1942, %v2010
    %v2027 = vadd.f32 %v1944, %v2011
    %v2028 = vadd.f32 %v1893, %v2012
    %v2029 = vadd.f32 %v1895, %v2013
    %v2030 = vadd.f32 %v1946, %v2014
    %v2031 = vadd.f32 %v1948, %v2015
    %v2032 = vadd.f32 %v1899, %v2016
    %v2033 = vadd.f32 %v1901, %v2017
    %v2034 = vadd.f32 %v1952, %v2018
    %v2035 = vadd.f32 %v1954, %v2019
    %v2036 = vadd.f32 %v1903, %v2020
    %v2037 = vadd.f32 %v1905, %v2021
    %v2038 = vadd.f32 %v1956, %v2022
    %v2039 = vadd.f32 %v1958, %v2023
    %v2040 = vmul.f32 %v2024, 0.7978846
    %v2041 = vmul.f32 %v2025, 0.7978846
    %v2042 = vmul.f32 %v2026, 0.7978846
    %v2043 = vmul.f32 %v2027, 0.7978846
    %v2044 = vmul.f32 %v2028, 0.7978846
    %v2045 = vmul.f32 %v2029, 0.7978846
    %v2046 = vmul.f32 %v2030, 0.7978846
    %v2047 = vmul.f32 %v2031, 0.7978846
    %v2048 = vmul.f32 %v2032, 0.7978846
    %v2049 = vmul.f32 %v2033, 0.7978846
    %v2050 = vmul.f32 %v2034, 0.7978846
    %v2051 = vmul.f32 %v2035, 0.7978846
    %v2052 = vmul.f32 %v2036, 0.7978846
    %v2053 = vmul.f32 %v2037, 0.7978846
    %v2054 = vmul.f32 %v2038, 0.7978846
    %v2055 = vmul.f32 %v2039, 0.7978846
    %v2056 = vtanh.pop %v2040
    %v2057 = vtanh.pop %v2041
    %v2058 = vtanh.pop %v2042
    %v2059 = vtanh.pop %v2043
    %v2060 = vtanh.pop %v2044
    %v2061 = vtanh.pop %v2045
    %v2062 = vtanh.pop %v2046
    %v2063 = vtanh.pop %v2047
    %v2064 = vtanh.pop %v2048
    %v2065 = vtanh.pop %v2049
    %v2066 = vtanh.pop %v2050
    %v2067 = vtanh.pop %v2051
    %v2068 = vtanh.pop %v2052
    %v2069 = vtanh.pop %v2053
    %v2070 = vtanh.pop %v2054
    %v2071 = vtanh.pop %v2055
    %v2072 = vadd.f32 %v2056, 1.0
    %v2073 = vadd.f32 %v2057, 1.0
    %v2074 = vadd.f32 %v2058, 1.0
    %v2075 = vadd.f32 %v2059, 1.0
    %v2076 = vadd.f32 %v2060, 1.0
    %v2077 = vadd.f32 %v2061, 1.0
    %v2078 = vadd.f32 %v2062, 1.0
    %v2079 = vadd.f32 %v2063, 1.0
    %v2080 = vadd.f32 %v2064, 1.0
    %v2081 = vadd.f32 %v2065, 1.0
    %v2082 = vadd.f32 %v2066, 1.0
    %v2083 = vadd.f32 %v2067, 1.0
    %v2084 = vadd.f32 %v2068, 1.0
    %v2085 = vadd.f32 %v2069, 1.0
    %v2086 = vadd.f32 %v2070, 1.0
    %v2087 = vadd.f32 %v2071, 1.0
    %v2088 = vmul.f32 %v1960, %v2072
    %v2089 = vmul.f32 %v1961, %v2073
    %v2090 = vmul.f32 %v1962, %v2074
    %v2091 = vmul.f32 %v1963, %v2075
    %v2092 = vmul.f32 %v1964, %v2076
    %v2093 = vmul.f32 %v1965, %v2077
    %v2094 = vmul.f32 %v1966, %v2078
    %v2095 = vmul.f32 %v1967, %v2079
    %v2096 = vmul.f32 %v1968, %v2080
    %v2097 = vmul.f32 %v1969, %v2081
    %v2098 = vmul.f32 %v1970, %v2082
    %v2099 = vmul.f32 %v1971, %v2083
    %v2100 = vmul.f32 %v1972, %v2084
    %v2101 = vmul.f32 %v1973, %v2085
    %v2102 = vmul.f32 %v1974, %v2086
    %v2103 = vmul.f32 %v1975, %v2087
    %v2104 = vpack.c.bf16 %v2092, %v2088
    %v2105 = vpack.c.bf16 %v2093, %v2089
    %v2106 = vpack.c.bf16 %v2094, %v2090
    %v2107 = vpack.c.bf16 %v2095, %v2091
    %v2108 = vpack.c.bf16 %v2100, %v2096
    %v2109 = vpack.c.bf16 %v2101, %v2097
    %v2110 = vpack.c.bf16 %v2102, %v2098
    %v2111 = vpack.c.bf16 %v2103, %v2099
    %v2112 = vld [vmem:[#allocation10] sm:$0xf]
    %v2113 = vld [vmem:[#allocation10 + $0x4] sm:$0xf]
    %v2114 = vld [vmem:[#allocation10 + $0x8] sm:$0xf]
    %v2115 = vld [vmem:[#allocation10 + $0xc] sm:$0xf]
    %v2116 = vld [vmem:[#allocation10 + $0x10] sm:$0xf]
    %v2117 = vld [vmem:[#allocation10 + $0x14] sm:$0xf]
    %v2118 = vld [vmem:[#allocation10 + $0x18] sm:$0xf]
    %v2119 = vld [vmem:[#allocation10 + $0x1c] sm:$0xf]
    %v2120 = vld [vmem:[#allocation10 + $0x20] sm:$0xf]
    %v2121 = vld [vmem:[#allocation10 + $0x24] sm:$0xf]
    %v2122 = vld [vmem:[#allocation10 + $0x28] sm:$0xf]
    %v2123 = vld [vmem:[#allocation10 + $0x2c] sm:$0xf]
    %v2124 = vld [vmem:[#allocation10 + $0x30] sm:$0xf]
    %v2125 = vld [vmem:[#allocation10 + $0x34] sm:$0xf]
    %v2126 = vld [vmem:[#allocation10 + $0x38] sm:$0xf]
    %v2127 = vld [vmem:[#allocation10 + $0x3c] sm:$0xf]
    %v2128 = vld [vmem:[#allocation10 + $0x40] sm:$0xf]
    %v2129 = vld [vmem:[#allocation10 + $0x44] sm:$0xf]
    %v2130 = vld [vmem:[#allocation10 + $0x48] sm:$0xf]
    %v2131 = vld [vmem:[#allocation10 + $0x4c] sm:$0xf]
    %v2132 = vld [vmem:[#allocation10 + $0x50] sm:$0xf]
    %v2133 = vld [vmem:[#allocation10 + $0x54] sm:$0xf]
    %v2134 = vld [vmem:[#allocation10 + $0x58] sm:$0xf]
    %v2135 = vld [vmem:[#allocation10 + $0x5c] sm:$0xf]
    %v2136 = vld [vmem:[#allocation10 + $0x60] sm:$0xf]
    %v2137 = vld [vmem:[#allocation10 + $0x64] sm:$0xf]
    %v2138 = vld [vmem:[#allocation10 + $0x68] sm:$0xf]
    %v2139 = vld [vmem:[#allocation10 + $0x6c] sm:$0xf]
    %v2140 = vld [vmem:[#allocation10 + $0x70] sm:$0xf]
    %v2141 = vld [vmem:[#allocation10 + $0x74] sm:$0xf]
    %v2142 = vld [vmem:[#allocation10 + $0x78] sm:$0xf]
    %v2143 = vld [vmem:[#allocation10 + $0x7c] sm:$0xf]
    %v2144 = vld [vmem:[#allocation10 + $0x80] sm:$0xf]
    %v2145 = vld [vmem:[#allocation10 + $0x84] sm:$0xf]
    %v2146 = vld [vmem:[#allocation10 + $0x88] sm:$0xf]
    %v2147 = vld [vmem:[#allocation10 + $0x8c] sm:$0xf]
    %v2148 = vld [vmem:[#allocation10 + $0x90] sm:$0xf]
    %v2149 = vld [vmem:[#allocation10 + $0x94] sm:$0xf]
    %v2150 = vld [vmem:[#allocation10 + $0x98] sm:$0xf]
    %v2151 = vld [vmem:[#allocation10 + $0x9c] sm:$0xf]
    %v2152 = vld [vmem:[#allocation10 + $0xa0] sm:$0xf]
    %v2153 = vld [vmem:[#allocation10 + $0xa4] sm:$0xf]
    %v2154 = vld [vmem:[#allocation10 + $0xa8] sm:$0xf]
    %v2155 = vld [vmem:[#allocation10 + $0xac] sm:$0xf]
    %v2156 = vld [vmem:[#allocation10 + $0xb0] sm:$0xf]
    %v2157 = vld [vmem:[#allocation10 + $0xb4] sm:$0xf]
    %v2158 = vld [vmem:[#allocation10 + $0xb8] sm:$0xf]
    %v2159 = vld [vmem:[#allocation10 + $0xbc] sm:$0xf]
    %v2160 = vld [vmem:[#allocation10 + $0xc0] sm:$0xf]
    %v2161 = vld [vmem:[#allocation10 + $0xc4] sm:$0xf]
    %v2162 = vld [vmem:[#allocation10 + $0xc8] sm:$0xf]
    %v2163 = vld [vmem:[#allocation10 + $0xcc] sm:$0xf]
    %v2164 = vld [vmem:[#allocation10 + $0xd0] sm:$0xf]
    %v2165 = vld [vmem:[#allocation10 + $0xd4] sm:$0xf]
    %v2166 = vld [vmem:[#allocation10 + $0xd8] sm:$0xf]
    %v2167 = vld [vmem:[#allocation10 + $0xdc] sm:$0xf]
    %v2168 = vld [vmem:[#allocation10 + $0xe0] sm:$0xf]
    %v2169 = vld [vmem:[#allocation10 + $0xe4] sm:$0xf]
    %v2170 = vld [vmem:[#allocation10 + $0xe8] sm:$0xf]
    %v2171 = vld [vmem:[#allocation10 + $0xec] sm:$0xf]
    %v2172 = vld [vmem:[#allocation10 + $0xf0] sm:$0xf]
    %v2173 = vld [vmem:[#allocation10 + $0xf4] sm:$0xf]
    %v2174 = vld [vmem:[#allocation10 + $0xf8] sm:$0xf]
    %v2175 = vld [vmem:[#allocation10 + $0xfc] sm:$0xf]
    %v2176 = vld [vmem:[%s10] sm:$0x1]
    %v2178 = vlaneseq
    %v2179 = vshrl.u32 %v2178, 7
    %v2180 = vsub.s32 0, %v2179
    %v2181 = vrot.slane %v2176, %v2180
    %v2247 = vunpack.c.l.b16 %v2112
    %v2248 = vunpack.c.l.b16 %v2113
    %v2249 = vunpack.c.l.b16 %v2114
    %v2250 = vunpack.c.l.b16 %v2115
    %v2251 = vunpack.c.l.b16 %v2116
    %v2252 = vunpack.c.l.b16 %v2117
    %v2253 = vunpack.c.l.b16 %v2118
    %v2254 = vunpack.c.l.b16 %v2119
    %v2255 = vunpack.c.l.b16 %v2120
    %v2256 = vunpack.c.l.b16 %v2121
    %v2257 = vunpack.c.l.b16 %v2122
    %v2258 = vunpack.c.l.b16 %v2123
    %v2259 = vunpack.c.l.b16 %v2124
    %v2260 = vunpack.c.l.b16 %v2125
    %v2261 = vunpack.c.l.b16 %v2126
    %v2262 = vunpack.c.l.b16 %v2127
    %v2263 = vunpack.c.l.b16 %v2128
    %v2264 = vunpack.c.l.b16 %v2129
    %v2265 = vunpack.c.l.b16 %v2130
    %v2266 = vunpack.c.l.b16 %v2131
    %v2267 = vunpack.c.l.b16 %v2132
    %v2268 = vunpack.c.l.b16 %v2133
    %v2269 = vunpack.c.l.b16 %v2134
    %v2270 = vunpack.c.l.b16 %v2135
    %v2271 = vunpack.c.l.b16 %v2136
    %v2272 = vunpack.c.l.b16 %v2137
    %v2273 = vunpack.c.l.b16 %v2138
    %v2274 = vunpack.c.l.b16 %v2139
    %v2275 = vunpack.c.l.b16 %v2140
    %v2276 = vunpack.c.l.b16 %v2141
    %v2277 = vunpack.c.l.b16 %v2142
    %v2278 = vunpack.c.l.b16 %v2143
    %v2279 = vunpack.c.l.b16 %v2144
    %v2280 = vunpack.c.l.b16 %v2145
    %v2281 = vunpack.c.l.b16 %v2146
    %v2282 = vunpack.c.l.b16 %v2147
    %v2283 = vunpack.c.l.b16 %v2148
    %v2284 = vunpack.c.l.b16 %v2149
    %v2285 = vunpack.c.l.b16 %v2150
    %v2286 = vunpack.c.l.b16 %v2151
    %v2287 = vunpack.c.l.b16 %v2152
    %v2288 = vunpack.c.l.b16 %v2153
    %v2289 = vunpack.c.l.b16 %v2154
    %v2290 = vunpack.c.l.b16 %v2155
    %v2291 = vunpack.c.l.b16 %v2156
    %v2292 = vunpack.c.l.b16 %v2157
    %v2293 = vunpack.c.l.b16 %v2158
    %v2294 = vunpack.c.l.b16 %v2159
    %v2295 = vunpack.c.l.b16 %v2160
    %v2296 = vunpack.c.l.b16 %v2161
    %v2297 = vunpack.c.l.b16 %v2162
    %v2298 = vunpack.c.l.b16 %v2163
    %v2299 = vunpack.c.l.b16 %v2164
    %v2300 = vunpack.c.l.b16 %v2165
    %v2301 = vunpack.c.l.b16 %v2166
    %v2302 = vunpack.c.l.b16 %v2167
    %v2303 = vunpack.c.l.b16 %v2168
    %v2304 = vunpack.c.l.b16 %v2169
    %v2305 = vunpack.c.l.b16 %v2170
    %v2306 = vunpack.c.l.b16 %v2171
    %v2307 = vunpack.c.l.b16 %v2172
    %v2308 = vunpack.c.l.b16 %v2173
    %v2309 = vunpack.c.l.b16 %v2174
    %v2310 = vunpack.c.l.b16 %v2175
    %v2311 = vpack.c.b16 %v2248, %v2247
    %v2312 = vpack.c.b16 %v2250, %v2249
    %v2313 = vpack.c.b16 %v2252, %v2251
    %v2314 = vpack.c.b16 %v2254, %v2253
    %v2315 = vpack.c.b16 %v2256, %v2255
    %v2316 = vpack.c.b16 %v2258, %v2257
    %v2317 = vpack.c.b16 %v2260, %v2259
    %v2318 = vpack.c.b16 %v2262, %v2261
    %v2319 = vpack.c.b16 %v2264, %v2263
    %v2320 = vpack.c.b16 %v2266, %v2265
    %v2321 = vpack.c.b16 %v2268, %v2267
    %v2322 = vpack.c.b16 %v2270, %v2269
    %v2323 = vpack.c.b16 %v2272, %v2271
    %v2324 = vpack.c.b16 %v2274, %v2273
    %v2325 = vpack.c.b16 %v2276, %v2275
    %v2326 = vpack.c.b16 %v2278, %v2277
    %v2327 = vpack.c.b16 %v2280, %v2279
    %v2328 = vpack.c.b16 %v2282, %v2281
    %v2329 = vpack.c.b16 %v2284, %v2283
    %v2330 = vpack.c.b16 %v2286, %v2285
    %v2331 = vpack.c.b16 %v2288, %v2287
    %v2332 = vpack.c.b16 %v2290, %v2289
    %v2333 = vpack.c.b16 %v2292, %v2291
    %v2334 = vpack.c.b16 %v2294, %v2293
    %v2335 = vpack.c.b16 %v2296, %v2295
    %v2336 = vpack.c.b16 %v2298, %v2297
    %v2337 = vpack.c.b16 %v2300, %v2299
    %v2338 = vpack.c.b16 %v2302, %v2301
    %v2339 = vpack.c.b16 %v2304, %v2303
    %v2340 = vpack.c.b16 %v2306, %v2305
    %v2341 = vpack.c.b16 %v2308, %v2307
    %v2342 = vpack.c.b16 %v2310, %v2309
    %2375 = vmatprep.subr.bf16.mxu0 0
    %2376 = vmatpush1.bf16.msra.mxu0 %v2311
    %2377 = vmatprep.subr.bf16.mxu0 0
    %2378 = vmatpush1.bf16.msra.mxu0 %v2312
    %2379 = vmatprep.subr.bf16.mxu0 0
    %2380 = vmatpush1.bf16.msra.mxu0 %v2313
    %2381 = vmatprep.subr.bf16.mxu0 0
    %2382 = vmatpush1.bf16.msra.mxu0 %v2314
    %2383 = vmatprep.subr.bf16.mxu0 0
    %2384 = vmatpush1.bf16.msra.mxu0 %v2315
    %2385 = vmatprep.subr.bf16.mxu0 0
    %2386 = vmatpush1.bf16.msra.mxu0 %v2316
    %2387 = vmatprep.subr.bf16.mxu0 0
    %2388 = vmatpush1.bf16.msra.mxu0 %v2317
    %2389 = vmatprep.subr.bf16.mxu0 0
    %2390 = vmatpush1.bf16.msra.mxu0 %v2318
    %2391 = vmatprep.subr.bf16.mxu0 0
    %2392 = vmatpush1.bf16.msra.mxu0 %v2319
    %2393 = vmatprep.subr.bf16.mxu0 0
    %2394 = vmatpush1.bf16.msra.mxu0 %v2320
    %2395 = vmatprep.subr.bf16.mxu0 0
    %2396 = vmatpush1.bf16.msra.mxu0 %v2321
    %2397 = vmatprep.subr.bf16.mxu0 0
    %2398 = vmatpush1.bf16.msra.mxu0 %v2322
    %2399 = vmatprep.subr.bf16.mxu0 0
    %2400 = vmatpush1.bf16.msra.mxu0 %v2323
    %2401 = vmatprep.subr.bf16.mxu0 0
    %2402 = vmatpush1.bf16.msra.mxu0 %v2324
    %2403 = vmatprep.subr.bf16.mxu0 0
    %2404 = vmatpush1.bf16.msra.mxu0 %v2325
    %2405 = vmatprep.subr.bf16.mxu0 0
    %2406 = vmatpush1.bf16.msra.mxu0 %v2326
    %2407 = vmatprep.mubr.bf16.mxu0 %v2105
    %2408 = vmatmul.mubr.bf16.gmra.mrb[0].mxu0 %v2104
    %v2409 = vpop.f32.mrb[0].mxu0
    %v2410 = vadd.f32 %v2181, %v2409
    %v2411 = vpop.f32.mrb[0].mxu0
    %v2412 = vpop.f32.mrb[0].mxu0
    %v2413 = vadd.f32 %v2181, %v2412
    %v2414 = vpop.f32.mrb[0].mxu0
    %2415 = vmatprep.mubr.bf16.mxu0 %v2109
    %2416 = vmatmul.mubr.bf16.gmra.mrb[0].mxu0 %v2108
    %v2417 = vpop.f32.mrb[0].mxu0
    %v2418 = vadd.f32 %v2181, %v2417
    %v2419 = vpop.f32.mrb[0].mxu0
    %v2420 = vpop.f32.mrb[0].mxu0
    %v2421 = vadd.f32 %v2181, %v2420
    %v2422 = vpop.f32.mrb[0].mxu0
    %2423 = vdwg.mxu0
    %2424 = vmatprep.subr.bf16.mxu0 0
    %2425 = vmatpush1.bf16.msra.mxu0 %v2327
    %2426 = vmatprep.subr.bf16.mxu0 0
    %2427 = vmatpush1.bf16.msra.mxu0 %v2328
    %2428 = vmatprep.subr.bf16.mxu0 0
    %2429 = vmatpush1.bf16.msra.mxu0 %v2329
    %2430 = vmatprep.subr.bf16.mxu0 0
    %2431 = vmatpush1.bf16.msra.mxu0 %v2330
    %2432 = vmatprep.subr.bf16.mxu0 0
    %2433 = vmatpush1.bf16.msra.mxu0 %v2331
    %2434 = vmatprep.subr.bf16.mxu0 0
    %2435 = vmatpush1.bf16.msra.mxu0 %v2332
    %2436 = vmatprep.subr.bf16.mxu0 0
    %2437 = vmatpush1.bf16.msra.mxu0 %v2333
    %2438 = vmatprep.subr.bf16.mxu0 0
    %2439 = vmatpush1.bf16.msra.mxu0 %v2334
    %2440 = vmatprep.subr.bf16.mxu0 0
    %2441 = vmatpush1.bf16.msra.mxu0 %v2335
    %2442 = vmatprep.subr.bf16.mxu0 0
    %2443 = vmatpush1.bf16.msra.mxu0 %v2336
    %2444 = vmatprep.subr.bf16.mxu0 0
    %2445 = vmatpush1.bf16.msra.mxu0 %v2337
    %2446 = vmatprep.subr.bf16.mxu0 0
    %2447 = vmatpush1.bf16.msra.mxu0 %v2338
    %2448 = vmatprep.subr.bf16.mxu0 0
    %2449 = vmatpush1.bf16.msra.mxu0 %v2339
    %2450 = vmatprep.subr.bf16.mxu0 0
    %2451 = vmatpush1.bf16.msra.mxu0 %v2340
    %2452 = vmatprep.subr.bf16.mxu0 0
    %2453 = vmatpush1.bf16.msra.mxu0 %v2341
    %2454 = vmatprep.subr.bf16.mxu0 0
    %2455 = vmatpush1.bf16.msra.mxu0 %v2342
    %2456 = vmatprep.mubr.bf16.mxu0 %v2107
    %2457 = vmatmul.mubr.bf16.gmra.mrb[0].mxu0 %v2106
    %v2458 = vpop.f32.mrb[0].mxu0
    %v2459 = vadd.f32 %v2410, %v2458
    %v2460 = vpop.f32.mrb[0].mxu0
    %v2461 = vpop.f32.mrb[0].mxu0
    %v2462 = vadd.f32 %v2413, %v2461
    %v2463 = vpop.f32.mrb[0].mxu0
    %2464 = vmatprep.mubr.bf16.mxu0 %v2111
    %2465 = vmatmul.mubr.bf16.gmra.mrb[0].mxu0 %v2110
    %v2466 = vpop.f32.mrb[0].mxu0
    %v2467 = vadd.f32 %v2418, %v2466
    %v2468 = vpop.f32.mrb[0].mxu0
    %v2469 = vpop.f32.mrb[0].mxu0
    %v2470 = vadd.f32 %v2421, %v2469
    %v2471 = vpop.f32.mrb[0].mxu0
    %2472 = vdwg.mxu0
    %v2473 = vadd.f32 %v2459, %v1634
    %v2474 = vadd.f32 %v2462, %v1635
    %v2475 = vadd.f32 %v2467, %v1636
    %v2476 = vadd.f32 %v2470, %v1637
    %v2477 = vld [vmem:[%s11] sm:$0x1]
    %v2478 = vld [vmem:[%s12] sm:$0x1]
    %2479 = vadd.xlane.f32.xlu0 %v2473
    %v2480 = vpop.xlane.xlu0 %2479
    %2481 = vadd.xlane.f32.xlu0 %v2474
    %v2482 = vpop.xlane.xlu0 %2481
    %2483 = vadd.xlane.f32.xlu0 %v2475
    %v2484 = vpop.xlane.xlu0 %2483
    %2485 = vadd.xlane.f32.xlu0 %v2476
    %v2486 = vpop.xlane.xlu0 %2485
    %v2487 = vmul.f32 %v2480, %v1581
    %v2488 = vmul.f32 %v2482, %v1581
    %v2489 = vmul.f32 %v2484, %v1581
    %v2490 = vmul.f32 %v2486, %v1581
    %v2491 = vsub.f32 %v2473, %v2487
    %v2492 = vsub.f32 %v2474, %v2488
    %v2493 = vsub.f32 %v2475, %v2489
    %v2494 = vsub.f32 %v2476, %v2490
    %v2495 = vmul.f32 %v2491, %v2491
    %v2496 = vmul.f32 %v2492, %v2492
    %v2497 = vmul.f32 %v2493, %v2493
    %v2498 = vmul.f32 %v2494, %v2494
    %2499 = vadd.xlane.f32.xlu0 %v2495
    %v2500 = vpop.xlane.xlu0 %2499
    %2501 = vadd.xlane.f32.xlu0 %v2496
    %v2502 = vpop.xlane.xlu0 %2501
    %2503 = vadd.xlane.f32.xlu0 %v2497
    %v2504 = vpop.xlane.xlu0 %2503
    %2505 = vadd.xlane.f32.xlu0 %v2498
    %v2506 = vpop.xlane.xlu0 %2505
    %v2507 = vmul.f32 %v2500, %v1581
    %v2508 = vmul.f32 %v2502, %v1581
    %v2509 = vmul.f32 %v2504, %v1581
    %v2510 = vmul.f32 %v2506, %v1581
    %v2511 = vadd.f32 %v2507, 1e-12
    %v2512 = vadd.f32 %v2508, 1e-12
    %v2513 = vadd.f32 %v2509, 1e-12
    %v2514 = vadd.f32 %v2510, 1e-12
    %v2515 = vrsqrt.pop %v2511
    %v2516 = vrsqrt.pop %v2512
    %v2517 = vrsqrt.pop %v2513
    %v2518 = vrsqrt.pop %v2514
    %v2519 = vmul.f32 %v2491, %v2515
    %v2520 = vmul.f32 %v2492, %v2516
    %v2521 = vmul.f32 %v2493, %v2517
    %v2522 = vmul.f32 %v2494, %v2518
    %v2524 = vlaneseq
    %v2525 = vshrl.u32 %v2524, 7
    %v2526 = vsub.s32 0, %v2525
    %v2527 = vrot.slane %v2477, %v2526
    %v2529 = vmul.f32 %v2519, %v2527
    %v2530 = vmul.f32 %v2520, %v2527
    %v2531 = vmul.f32 %v2521, %v2527
    %v2532 = vmul.f32 %v2522, %v2527
    %v2534 = vlaneseq
    %v2535 = vshrl.u32 %v2534, 7
    %v2536 = vsub.s32 0, %v2535
    %v2537 = vrot.slane %v2478, %v2536
    %v2539 = vadd.f32 %v2529, %v2537
    %v2540 = vadd.f32 %v2530, %v2537
    %v2541 = vadd.f32 %v2531, %v2537
    %v2542 = vadd.f32 %v2532, %v2537
    %2543 = vst [vmem:[#allocation11] sm:$0xff] %v2539
    %2544 = vst [vmem:[#allocation11 + $0x8] sm:$0xff] %v2540
    %2545 = vst [vmem:[#allocation11 + $0x10] sm:$0xff] %v2541
    %2546 = vst [vmem:[#allocation11 + $0x18] sm:$0xff] %v2542
    // Predicated region
    $region74: #{tpu_custom_call.1} parent=1 // pred_check
      _
    $region75: #{tpu_custom_call.1} parent=1 // pred_check_branch
      %2548 = sbr.rel (0) target = $region77
    $region76: #{tpu_custom_call.1} parent=1 // pred_region
      %s2550 = ssub.s32 512, 512
      %2551 = vsyncadd [#allocation4], %s2550
      %s2552 = sshll.u32 [#allocation11], 4
      %s2553 = int_to_ptr.vmem [resolvable:$true] %s2552
      %2558 = dma.vmem_to_hbm [thread:$0]  %s2553, 512, %s13, [#allocation4], 128, 128, 8
    $region77: #{tpu_custom_call.1} parent=1 // pred_fallthru
      _
    // Predicated region
    $region78: #{tpu_custom_call.1} parent=1 // pred_check
      _
    $region79: #{tpu_custom_call.1} parent=1 // pred_check_branch
      %2560 = sbr.rel (0) target = $region81
    $region80: #{tpu_custom_call.1} parent=1 // pred_region
      %2561 = dma.done [#allocation4], 512
    $region81: #{tpu_custom_call.1} parent=1 // pred_fallthru
      _
    %2562 = vsyncpa [#allocation3], 1
    %2563 = vsyncpa [#allocation6], 1
    %2564 = vsyncpa [#allocation9], 1
    %2565 = vsyncpa [#allocation4], 1

</llo_original>
